<compile_context>
chip_gen: v7x
topology: tpu7x:2x2x1
jax: 0.10.0
libtpu: 0.0.40
codegen_flags: <defaults>
</compile_context>

<pallas_src>
import math

import jax
import jax.numpy as jnp
from jax.experimental import pallas as pl

# ---------------- configuration (small synthetic shapes) ----------------
B = 2          # batch
S_T = 8        # target (decoder) sequence length
S_S = 8        # source (encoder) sequence length (== S_T so head constants are shared)
D_MODEL = 32
H = 4
D_K = D_MODEL // H
D_FF = 64
EPS = 1e-6
SCALE = 1.0 / math.sqrt(D_K)
LANE = 128     # lane-dense output width

assert S_T == S_S, "kernel shares the head-block constants between self- and cross-attention"


# ---------------- the fused Pallas kernel (whole problem, no grid) ----------------
def _decoder_block_kernel(act_ref, mask_ref, w_ref, ffw2_ref, out_ref):
    # ---- operands (4 DMAs total) ----
    x = act_ref[:B * S_T, :]          # (B*S_T, D)  f32
    enc = act_ref[B * S_T:, :]        # (B*S_S, D)  f32

    # ---- packed weight slab: static ref-view slices (no slicing of computed values) ----
    def wcol(i):                      # i-th (D, D) projection weight
        return w_ref[0:D_MODEL, i * D_MODEL:(i + 1) * D_MODEL]

    wq1, wk1, wv1, wo1 = wcol(0), wcol(1), wcol(2), wcol(3)
    wq2, wk2, wv2, wo2 = wcol(4), wcol(5), wcol(6), wcol(7)
    ffw1 = w_ref[0:D_MODEL, 8 * D_MODEL:8 * D_MODEL + D_FF]            # (D, D_FF)
    ffb2 = w_ref[D_MODEL:D_MODEL + 1, 0:D_MODEL]                       # (1, D)
    ffb1 = w_ref[D_MODEL:D_MODEL + 1, 8 * D_MODEL:8 * D_MODEL + D_FF]  # (1, D_FF)

    # ---- head-structure constants generated in-kernel (iota compares; power-of-2-safe
    #      float floor-div avoids integer vector division) ----
    hs = H * S_T
    r_i = jax.lax.broadcasted_iota(jnp.int32, (hs, D_MODEL), 0).astype(jnp.float32)
    c_i = jax.lax.broadcasted_iota(jnp.int32, (hs, D_MODEL), 1).astype(jnp.float32)
    # row block h keeps only head h's D_K feature columns
    hmask = (jnp.floor(r_i * (1.0 / S_T)) == jnp.floor(c_i * (1.0 / D_K))).astype(jnp.float32)

    rr = jax.lax.broadcasted_iota(jnp.int32, (hs, hs), 0).astype(jnp.float32)
    cc = jax.lax.broadcasted_iota(jnp.int32, (hs, hs), 1).astype(jnp.float32)
    # block-diagonal ones: per-head lane-block sums for the softmax denominator
    segsum = (jnp.floor(rr * (1.0 / S_T)) == jnp.floor(cc * (1.0 / S_T))).astype(jnp.float32)

    # ---- additive mask biases from the raw {0,1} masks (tiled once per head along lanes) ----
    tb = (mask_ref[:, :S_T] - 1.0) * 1e9        # (B*S_T, S_T)
    sb = (mask_ref[:, S_T:] - 1.0) * 1e9        # (B*S_T, S_S)
    tbias = jnp.concatenate([tb] * H, axis=1)   # (B*S_T, H*S_T)
    sbias = jnp.concatenate([sb] * H, axis=1)   # (B*S_T, H*S_S)

    def layer_norm(v):
        # PyTorch: alpha*(x-mean)/(std+eps)+bias, alpha=1, bias=0, unbiased std (ddof=1).
        mean = jnp.mean(v, axis=-1, keepdims=True)
        var = jnp.sum((v - mean) ** 2, axis=-1, keepdims=True) * (1.0 / (D_MODEL - 1))
        inv = pl.reciprocal(jnp.sqrt(var) + EPS, approx=False)   # tiny (16,1); keep exact
        return (v - mean) * inv

    def expand_kv(t):
        # (B*S_kv, D) -> (B, H*S_kv, D): rows tiled once per head (8-row-aligned concat),
        # then masked so block h keeps only head h's feature columns.  Lets one lane-dense
        # contraction produce all per-head scores/outputs without lane-splitting reshapes.
        t3 = t.reshape(B, S_T, D_MODEL)
        t3 = jnp.concatenate([t3] * H, axis=1)
        return t3 * hmask

    def attention(q, k, v, bias):
        km = expand_kv(k)                                  # (B, H*S_kv, D)
        vm = expand_kv(v)                                  # (B, H*S_kv, D)
        q3 = q.reshape(B, S_T, D_MODEL)
        s3 = jnp.einsum("bqd,bkd->bqk", q3, km,
                        preferred_element_type=jnp.float32)       # (B, S_q, H*S_kv)
        s2 = s3.reshape(B * S_T, hs) * SCALE + bias
        # Shared row-wide max across head blocks is exact softmax; safe at these magnitudes
        # (a per-head segmented max would be needed if per-head score ranges diverge widely).
        m = jnp.max(s2, axis=-1, keepdims=True)
        e = jnp.exp(s2 - m)
        denom = jnp.dot(e, segsum, preferred_element_type=jnp.float32)   # per-head block sums
        p = e * pl.reciprocal(denom, approx=True)          # EUP vrcp, own VLIW slot
        o3 = jnp.einsum("bqk,bkd->bqd", p.reshape(B, S_T, hs), vm,
                        preferred_element_type=jnp.float32)       # concatenated head outputs
        return o3.reshape(B * S_T, D_MODEL)

    # residual connection 0: self-attention, target mask
    xn = layer_norm(x)
    attn = attention(jnp.dot(xn, wq1, preferred_element_type=jnp.float32),
                     jnp.dot(xn, wk1, preferred_element_type=jnp.float32),
                     jnp.dot(xn, wv1, preferred_element_type=jnp.float32),
                     tbias)
    x = x + jnp.dot(attn, wo1, preferred_element_type=jnp.float32)

    # residual connection 1: cross-attention (K/V from raw encoder output), source mask
    xn = layer_norm(x)
    attn = attention(jnp.dot(xn, wq2, preferred_element_type=jnp.float32),
                     jnp.dot(enc, wk2, preferred_element_type=jnp.float32),
                     jnp.dot(enc, wv2, preferred_element_type=jnp.float32),
                     sbias)
    x = x + jnp.dot(attn, wo2, preferred_element_type=jnp.float32)

    # residual connection 2: feed-forward (Linear -> ReLU -> Linear)
    xn = layer_norm(x)
    h1 = jnp.maximum(
        jnp.dot(xn, ffw1, preferred_element_type=jnp.float32) + ffb1, 0.0)
    x = x + jnp.dot(h1, ffw2_ref[...], preferred_element_type=jnp.float32) + ffb2

    # lane-dense store: pad last dim to 128 so the output write is an unmasked full-vreg store
    pad = jnp.zeros((B * S_T, LANE - D_MODEL), jnp.float32)
    out_ref[...] = jnp.concatenate([x, pad], axis=-1).astype(out_ref.dtype)


# ---------------- one-time parameter packing (hoisted out of the per-call path) ----------------
def pack_params(p):
    """Pack all (D, *) weights + bias rows into one slab, ffw2 separate -> 2 weight operands."""
    w_top = jnp.concatenate(
        [p["wq1"], p["wk1"], p["wv1"], p["wo1"],
         p["wq2"], p["wk2"], p["wv2"], p["wo2"], p["ffw1"]], axis=1)          # (D, 8D+D_FF)
    bias_row = jnp.concatenate(
        [p["ffb2"], jnp.zeros((1, 7 * D_MODEL), jnp.float32), p["ffb1"]], axis=1)  # (1, 8D+D_FF)
    pad = jnp.zeros((7, 8 * D_MODEL + D_FF), jnp.float32)                    # 8-row alignment
    w_slab = jnp.concatenate([w_top, bias_row, pad], axis=0)                 # (D+8, 8D+D_FF)
    return {"w_slab": w_slab, "ffw2": p["ffw2"]}


# ---------------- wrapper ----------------
def decoder_block(x, enc, tgt_mask, src_mask, packed):
    """x: (B,S_T,D); enc: (B,S_S,D); masks: float {0,1} of shape (B,S_T,S_T)/(B,S_T,S_S)."""
    act = jnp.concatenate(
        [x.reshape(B * S_T, D_MODEL), enc.reshape(B * S_S, D_MODEL)], axis=0)   # (B*(S_T+S_S), D)
    mask_slab = jnp.concatenate(
        [tgt_mask.reshape(B * S_T, S_T), src_mask.reshape(B * S_T, S_S)], axis=1)  # (B*S_T, S_T+S_S)

    out_padded = pl.pallas_call(
        _decoder_block_kernel,
        out_shape=jax.ShapeDtypeStruct((B * S_T, LANE), jnp.float32),
    )(act, mask_slab, packed["w_slab"], packed["ffw2"])

    return out_padded[:, :D_MODEL].reshape(B, S_T, D_MODEL)


# ---------------- pure-JAX reference (for correctness check) ----------------
def _ref_layer_norm(v):
    mean = jnp.mean(v, axis=-1, keepdims=True)
    var = jnp.sum((v - mean) ** 2, axis=-1, keepdims=True) / (v.shape[-1] - 1)
    return (v - mean) / (jnp.sqrt(var) + EPS)


def _ref_mha(q_in, kv_in, mask, wq, wk, wv, wo):
    q = q_in @ wq
    k = kv_in @ wk
    v = kv_in @ wv
    b, sq, _ = q.shape
    sk = k.shape[1]
    q = q.reshape(b, sq, H, D_K).transpose(0, 2, 1, 3)
    k = k.reshape(b, sk, H, D_K).transpose(0, 2, 1, 3)
    v = v.reshape(b, sk, H, D_K).transpose(0, 2, 1, 3)
    s = jnp.einsum("bhqd,bhkd->bhqk", q, k) / jnp.sqrt(jnp.float32(D_K))
    s = jnp.where(mask[:, None] == 0, jnp.float32(-1e9), s)
    s = jax.nn.softmax(s, axis=-1)
    o = jnp.einsum("bhqk,bhkd->bhqd", s, v).transpose(0, 2, 1, 3).reshape(b, sq, H * D_K)
    return o @ wo


def _ref_decoder_block(x, enc, tgt_mask, src_mask, p):
    x = x + _ref_mha(_ref_layer_norm(x), _ref_layer_norm(x), tgt_mask,
                     p["wq1"], p["wk1"], p["wv1"], p["wo1"])
    x = x + _ref_mha(_ref_layer_norm(x), enc, src_mask,
                     p["wq2"], p["wk2"], p["wv2"], p["wo2"])
    xn = _ref_layer_norm(x)
    h1 = jnp.maximum(xn @ p["ffw1"] + p["ffb1"], 0.0)
    return x + (h1 @ p["ffw2"] + p["ffb2"])


# ---------------- main ----------------
if __name__ == "__main__":
    key = jax.random.PRNGKey(0)
    keys = jax.random.split(key, 16)

    def init(k, shape, scale=0.1):
        return (scale * jax.random.normal(k, shape)).astype(jnp.float32)

    params = {
        # self-attention projections, stored (in, out) so y = x @ W
        "wq1": init(keys[0], (D_MODEL, D_MODEL)),
        "wk1": init(keys[1], (D_MODEL, D_MODEL)),
        "wv1": init(keys[2], (D_MODEL, D_MODEL)),
        "wo1": init(keys[3], (D_MODEL, D_MODEL)),
        # cross-attention projections
        "wq2": init(keys[4], (D_MODEL, D_MODEL)),
        "wk2": init(keys[5], (D_MODEL, D_MODEL)),
        "wv2": init(keys[6], (D_MODEL, D_MODEL)),
        "wo2": init(keys[7], (D_MODEL, D_MODEL)),
        # feed-forward
        "ffw1": init(keys[8], (D_MODEL, D_FF)),
        "ffb1": init(keys[9], (1, D_FF)),
        "ffw2": init(keys[10], (D_FF, D_MODEL)),
        "ffb2": init(keys[11], (1, D_MODEL)),
    }
    packed = pack_params(params)   # one-time packing (hoisted out of the forward path)

    x = init(keys[12], (B, S_T, D_MODEL), scale=1.0)
    enc = init(keys[13], (B, S_S, D_MODEL), scale=1.0)
    # causal target mask, all-ones source mask (float {0,1}), as the module expects
    tgt_mask = jnp.tril(jnp.ones((S_T, S_T), jnp.float32))[None].repeat(B, axis=0)
    src_mask = jnp.ones((B, S_T, S_S), jnp.float32)

    out = jax.block_until_ready(decoder_block(x, enc, tgt_mask, src_mask, packed))
    ref = _ref_decoder_block(x, enc, tgt_mask, src_mask, params)

    assert out.shape == (B, S_T, D_MODEL)
    # 2e-3 tolerance: TPU f32 matmuls may run as bf16 MXU passes, the per-head softmax
    # denominator is an MXU segment-sum, and its reciprocal uses the approximate EUP path.
    assert jnp.allclose(out, ref, atol=2e-3, rtol=2e-3), "mismatch vs. JAX reference"

    # TODO(synk): dropout treated as identity (eval / p=0); training-mode dropout RNG not implemented.
    print("KERNEL_OK")
</pallas_src>

<mosaic_0001>
module attributes {stable_mosaic.version = 11 : i64} {
  func.func @_decoder_block_kernel(%arg0: memref<32x32xf32, #tpu.memory_space<vmem>>, %arg1: memref<16x16xf32, #tpu.memory_space<vmem>>, %arg2: memref<40x320xf32, #tpu.memory_space<vmem>>, %arg3: memref<64x32xf32, #tpu.memory_space<vmem>>, %arg4: memref<16x128xf32, #tpu.memory_space<vmem>>) attributes {dimension_semantics = [], scalar_prefetch = 0 : i64, scratch_operands = 0 : i64, tpu.core_type = #tpu.core_type<tc>} {
    %c0 = arith.constant 0 : index
    %c0_0 = arith.constant 0 : index
    %0 = vector.load %arg0[%c0, %c0_0] : memref<32x32xf32, #tpu.memory_space<vmem>>, vector<16x32xf32>
    %c16 = arith.constant 16 : index
    %c0_1 = arith.constant 0 : index
    %1 = vector.load %arg0[%c16, %c0_1] : memref<32x32xf32, #tpu.memory_space<vmem>>, vector<16x32xf32>
    %c0_2 = arith.constant 0 : index
    %c0_3 = arith.constant 0 : index
    %2 = vector.load %arg2[%c0_2, %c0_3] : memref<40x320xf32, #tpu.memory_space<vmem>>, vector<32x32xf32>
    %c0_4 = arith.constant 0 : index
    %c32 = arith.constant 32 : index
    %3 = vector.load %arg2[%c0_4, %c32] : memref<40x320xf32, #tpu.memory_space<vmem>>, vector<32x32xf32>
    %c0_5 = arith.constant 0 : index
    %c64 = arith.constant 64 : index
    %4 = vector.load %arg2[%c0_5, %c64] : memref<40x320xf32, #tpu.memory_space<vmem>>, vector<32x32xf32>
    %c0_6 = arith.constant 0 : index
    %c96 = arith.constant 96 : index
    %5 = vector.load %arg2[%c0_6, %c96] : memref<40x320xf32, #tpu.memory_space<vmem>>, vector<32x32xf32>
    %c0_7 = arith.constant 0 : index
    %c128 = arith.constant 128 : index
    %6 = vector.load %arg2[%c0_7, %c128] : memref<40x320xf32, #tpu.memory_space<vmem>>, vector<32x32xf32>
    %c0_8 = arith.constant 0 : index
    %c160 = arith.constant 160 : index
    %7 = vector.load %arg2[%c0_8, %c160] : memref<40x320xf32, #tpu.memory_space<vmem>>, vector<32x32xf32>
    %c0_9 = arith.constant 0 : index
    %c192 = arith.constant 192 : index
    %8 = vector.load %arg2[%c0_9, %c192] : memref<40x320xf32, #tpu.memory_space<vmem>>, vector<32x32xf32>
    %c0_10 = arith.constant 0 : index
    %c224 = arith.constant 224 : index
    %9 = vector.load %arg2[%c0_10, %c224] : memref<40x320xf32, #tpu.memory_space<vmem>>, vector<32x32xf32>
    %c0_11 = arith.constant 0 : index
    %c256 = arith.constant 256 : index
    %10 = vector.load %arg2[%c0_11, %c256] : memref<40x320xf32, #tpu.memory_space<vmem>>, vector<32x64xf32>
    %c32_12 = arith.constant 32 : index
    %c0_13 = arith.constant 0 : index
    %11 = vector.load %arg2[%c32_12, %c0_13] : memref<40x320xf32, #tpu.memory_space<vmem>>, vector<1x32xf32>
    %c32_14 = arith.constant 32 : index
    %c256_15 = arith.constant 256 : index
    %12 = vector.load %arg2[%c32_14, %c256_15] : memref<40x320xf32, #tpu.memory_space<vmem>>, vector<1x64xf32>
    %13 = tpu.iota {dimensions = array<i32: 0>} : vector<32x32xi32>
    %14 = arith.sitofp %13 : vector<32x32xi32> to vector<32x32xf32>
    %15 = tpu.iota {dimensions = array<i32: 1>} : vector<32x32xi32>
    %16 = arith.sitofp %15 : vector<32x32xi32> to vector<32x32xf32>
    %cst = arith.constant 1.250000e-01 : f32
    %17 = vector.broadcast %cst : f32 to vector<32x32xf32>
    %18 = arith.mulf %14, %17 : vector<32x32xf32>
    %19 = math.floor %18 : vector<32x32xf32>
    %cst_16 = arith.constant 1.250000e-01 : f32
    %20 = vector.broadcast %cst_16 : f32 to vector<32x32xf32>
    %21 = arith.mulf %16, %20 : vector<32x32xf32>
    %22 = math.floor %21 : vector<32x32xf32>
    %23 = arith.cmpf oeq, %19, %22 : vector<32x32xf32>
    %24 = arith.extui %23 : vector<32x32xi1> to vector<32x32xi32>
    %25 = arith.sitofp %24 : vector<32x32xi32> to vector<32x32xf32>
    %26 = tpu.iota {dimensions = array<i32: 0>} : vector<32x32xi32>
    %27 = arith.sitofp %26 : vector<32x32xi32> to vector<32x32xf32>
    %28 = tpu.iota {dimensions = array<i32: 1>} : vector<32x32xi32>
    %29 = arith.sitofp %28 : vector<32x32xi32> to vector<32x32xf32>
    %cst_17 = arith.constant 1.250000e-01 : f32
    %30 = vector.broadcast %cst_17 : f32 to vector<32x32xf32>
    %31 = arith.mulf %27, %30 : vector<32x32xf32>
    %32 = math.floor %31 : vector<32x32xf32>
    %cst_18 = arith.constant 1.250000e-01 : f32
    %33 = vector.broadcast %cst_18 : f32 to vector<32x32xf32>
    %34 = arith.mulf %29, %33 : vector<32x32xf32>
    %35 = math.floor %34 : vector<32x32xf32>
    %36 = arith.cmpf oeq, %32, %35 : vector<32x32xf32>
    %37 = arith.extui %36 : vector<32x32xi1> to vector<32x32xi32>
    %38 = arith.sitofp %37 : vector<32x32xi32> to vector<32x32xf32>
    %c0_19 = arith.constant 0 : index
    %c0_20 = arith.constant 0 : index
    %39 = vector.load %arg1[%c0_19, %c0_20] : memref<16x16xf32, #tpu.memory_space<vmem>>, vector<16x8xf32>
    %cst_21 = arith.constant 1.000000e+00 : f32
    %40 = vector.broadcast %cst_21 : f32 to vector<16x8xf32>
    %41 = arith.subf %39, %40 : vector<16x8xf32>
    %cst_22 = arith.constant 1.000000e+09 : f32
    %42 = vector.broadcast %cst_22 : f32 to vector<16x8xf32>
    %43 = arith.mulf %41, %42 : vector<16x8xf32>
    %c0_23 = arith.constant 0 : index
    %c8 = arith.constant 8 : index
    %44 = vector.load %arg1[%c0_23, %c8] : memref<16x16xf32, #tpu.memory_space<vmem>>, vector<16x8xf32>
    %cst_24 = arith.constant 1.000000e+00 : f32
    %45 = vector.broadcast %cst_24 : f32 to vector<16x8xf32>
    %46 = arith.subf %44, %45 : vector<16x8xf32>
    %cst_25 = arith.constant 1.000000e+09 : f32
    %47 = vector.broadcast %cst_25 : f32 to vector<16x8xf32>
    %48 = arith.mulf %46, %47 : vector<16x8xf32>
    %49 = tpu.concatenate %43, %43, %43, %43 in 1 : vector<16x8xf32>, vector<16x8xf32>, vector<16x8xf32>, vector<16x8xf32> -> vector<16x32xf32>
    %50 = tpu.concatenate %48, %48, %48, %48 in 1 : vector<16x8xf32>, vector<16x8xf32>, vector<16x8xf32>, vector<16x8xf32> -> vector<16x32xf32>
    %cst_26 = arith.constant dense<0.000000e+00> : vector<16xf32>
    %51 = vector.multi_reduction <add>, %0, %cst_26 [1] : vector<16x32xf32> to vector<16xf32>
    %52 = vector.shape_cast %51 : vector<16xf32> to vector<16x1xf32>
    %cst_27 = arith.constant 3.200000e+01 : f32
    %53 = vector.broadcast %cst_27 : f32 to vector<16x1xf32>
    %54 = arith.divf %52, %53 : vector<16x1xf32>
    %55 = vector.broadcast %54 : vector<16x1xf32> to vector<16x32xf32>
    %56 = arith.subf %0, %55 : vector<16x32xf32>
    %57 = arith.mulf %56, %56 : vector<16x32xf32>
    %cst_28 = arith.constant dense<0.000000e+00> : vector<16xf32>
    %58 = vector.multi_reduction <add>, %57, %cst_28 [1] : vector<16x32xf32> to vector<16xf32>
    %59 = vector.shape_cast %58 : vector<16xf32> to vector<16x1xf32>
    %cst_29 = arith.constant 0.0322580636 : f32
    %60 = vector.broadcast %cst_29 : f32 to vector<16x1xf32>
    %61 = arith.mulf %59, %60 : vector<16x1xf32>
    %62 = math.sqrt %61 : vector<16x1xf32>
    %cst_30 = arith.constant 9.99999997E-7 : f32
    %63 = vector.broadcast %cst_30 : f32 to vector<16x1xf32>
    %64 = arith.addf %62, %63 : vector<16x1xf32>
    %65 = tpu.reciprocal %64 : vector<16x1xf32> -> vector<16x1xf32>
    %66 = vector.broadcast %54 : vector<16x1xf32> to vector<16x32xf32>
    %67 = arith.subf %0, %66 : vector<16x32xf32>
    %68 = vector.broadcast %65 : vector<16x1xf32> to vector<16x32xf32>
    %69 = arith.mulf %67, %68 : vector<16x32xf32>
    %cst_31 = arith.constant dense<0.000000e+00> : vector<16x32xf32>
    %70 = tpu.matmul %69, %2, %cst_31 {dimension_numbers = #tpu.dot_dimension_numbers<[1], [0], [0], [1], [0, 0, 1, 1], [], []>} : vector<16x32xf32>, vector<32x32xf32>, vector<16x32xf32> -> vector<16x32xf32>
    %cst_32 = arith.constant dense<0.000000e+00> : vector<16x32xf32>
    %71 = tpu.matmul %69, %3, %cst_32 {dimension_numbers = #tpu.dot_dimension_numbers<[1], [0], [0], [1], [0, 0, 1, 1], [], []>} : vector<16x32xf32>, vector<32x32xf32>, vector<16x32xf32> -> vector<16x32xf32>
    %cst_33 = arith.constant dense<0.000000e+00> : vector<16x32xf32>
    %72 = tpu.matmul %69, %4, %cst_33 {dimension_numbers = #tpu.dot_dimension_numbers<[1], [0], [0], [1], [0, 0, 1, 1], [], []>} : vector<16x32xf32>, vector<32x32xf32>, vector<16x32xf32> -> vector<16x32xf32>
    %73 = vector.shape_cast %71 : vector<16x32xf32> to vector<2x8x32xf32>
    %74 = tpu.concatenate %73, %73, %73, %73 in 1 : vector<2x8x32xf32>, vector<2x8x32xf32>, vector<2x8x32xf32>, vector<2x8x32xf32> -> vector<2x32x32xf32>
    %75 = vector.shape_cast %25 : vector<32x32xf32> to vector<1x32x32xf32>
    %76 = vector.broadcast %75 : vector<1x32x32xf32> to vector<2x32x32xf32>
    %77 = arith.mulf %74, %76 : vector<2x32x32xf32>
    %78 = vector.shape_cast %72 : vector<16x32xf32> to vector<2x8x32xf32>
    %79 = tpu.concatenate %78, %78, %78, %78 in 1 : vector<2x8x32xf32>, vector<2x8x32xf32>, vector<2x8x32xf32>, vector<2x8x32xf32> -> vector<2x32x32xf32>
    %80 = vector.shape_cast %25 : vector<32x32xf32> to vector<1x32x32xf32>
    %81 = vector.broadcast %80 : vector<1x32x32xf32> to vector<2x32x32xf32>
    %82 = arith.mulf %79, %81 : vector<2x32x32xf32>
    %83 = vector.shape_cast %70 : vector<16x32xf32> to vector<2x8x32xf32>
    "tpu.trace_start"() <{level = 10 : i32, message = "bqd,bkd->bqk"}> : () -> ()
    %cst_34 = arith.constant dense<0.000000e+00> : vector<2x8x32xf32>
    %84 = tpu.matmul %83, %77, %cst_34 {dimension_numbers = #tpu.dot_dimension_numbers<[2], [2], [1], [1], [0, 0, 0, 1, 1, 1], [0], [0]>} : vector<2x8x32xf32>, vector<2x32x32xf32>, vector<2x8x32xf32> -> vector<2x8x32xf32>
    "tpu.trace_stop"() : () -> ()
    %85 = vector.shape_cast %84 : vector<2x8x32xf32> to vector<16x32xf32>
    %cst_35 = arith.constant 0.353553385 : f32
    %86 = vector.broadcast %cst_35 : f32 to vector<16x32xf32>
    %87 = arith.mulf %85, %86 : vector<16x32xf32>
    %88 = arith.addf %87, %49 : vector<16x32xf32>
    %cst_36 = arith.constant dense<0xFF800000> : vector<16xf32>
    %89 = vector.multi_reduction <maximumf>, %88, %cst_36 [1] : vector<16x32xf32> to vector<16xf32>
    %90 = vector.shape_cast %89 : vector<16xf32> to vector<16x1xf32>
    %91 = vector.broadcast %90 : vector<16x1xf32> to vector<16x32xf32>
    %92 = arith.subf %88, %91 : vector<16x32xf32>
    %93 = math.exp %92 : vector<16x32xf32>
    %cst_37 = arith.constant dense<0.000000e+00> : vector<16x32xf32>
    %94 = tpu.matmul %93, %38, %cst_37 {dimension_numbers = #tpu.dot_dimension_numbers<[1], [0], [0], [1], [0, 0, 1, 1], [], []>} : vector<16x32xf32>, vector<32x32xf32>, vector<16x32xf32> -> vector<16x32xf32>
    %95 = tpu.reciprocal %94 {approx = true} : vector<16x32xf32> -> vector<16x32xf32>
    %96 = arith.mulf %93, %95 : vector<16x32xf32>
    %97 = vector.shape_cast %96 : vector<16x32xf32> to vector<2x8x32xf32>
    "tpu.trace_start"() <{level = 10 : i32, message = "bqk,bkd->bqd"}> : () -> ()
    %cst_38 = arith.constant dense<0.000000e+00> : vector<2x8x32xf32>
    %98 = tpu.matmul %97, %82, %cst_38 {dimension_numbers = #tpu.dot_dimension_numbers<[2], [1], [1], [2], [0, 0, 0, 1, 1, 2], [0], [0]>} : vector<2x8x32xf32>, vector<2x32x32xf32>, vector<2x8x32xf32> -> vector<2x8x32xf32>
    "tpu.trace_stop"() : () -> ()
    %99 = vector.shape_cast %98 : vector<2x8x32xf32> to vector<16x32xf32>
    %cst_39 = arith.constant dense<0.000000e+00> : vector<16x32xf32>
    %100 = tpu.matmul %99, %5, %cst_39 {dimension_numbers = #tpu.dot_dimension_numbers<[1], [0], [0], [1], [0, 0, 1, 1], [], []>} : vector<16x32xf32>, vector<32x32xf32>, vector<16x32xf32> -> vector<16x32xf32>
    %101 = arith.addf %0, %100 : vector<16x32xf32>
    %cst_40 = arith.constant dense<0.000000e+00> : vector<16xf32>
    %102 = vector.multi_reduction <add>, %101, %cst_40 [1] : vector<16x32xf32> to vector<16xf32>
    %103 = vector.shape_cast %102 : vector<16xf32> to vector<16x1xf32>
    %cst_41 = arith.constant 3.200000e+01 : f32
    %104 = vector.broadcast %cst_41 : f32 to vector<16x1xf32>
    %105 = arith.divf %103, %104 : vector<16x1xf32>
    %106 = vector.broadcast %105 : vector<16x1xf32> to vector<16x32xf32>
    %107 = arith.subf %101, %106 : vector<16x32xf32>
    %108 = arith.mulf %107, %107 : vector<16x32xf32>
    %cst_42 = arith.constant dense<0.000000e+00> : vector<16xf32>
    %109 = vector.multi_reduction <add>, %108, %cst_42 [1] : vector<16x32xf32> to vector<16xf32>
    %110 = vector.shape_cast %109 : vector<16xf32> to vector<16x1xf32>
    %cst_43 = arith.constant 0.0322580636 : f32
    %111 = vector.broadcast %cst_43 : f32 to vector<16x1xf32>
    %112 = arith.mulf %110, %111 : vector<16x1xf32>
    %113 = math.sqrt %112 : vector<16x1xf32>
    %cst_44 = arith.constant 9.99999997E-7 : f32
    %114 = vector.broadcast %cst_44 : f32 to vector<16x1xf32>
    %115 = arith.addf %113, %114 : vector<16x1xf32>
    %116 = tpu.reciprocal %115 : vector<16x1xf32> -> vector<16x1xf32>
    %117 = vector.broadcast %105 : vector<16x1xf32> to vector<16x32xf32>
    %118 = arith.subf %101, %117 : vector<16x32xf32>
    %119 = vector.broadcast %116 : vector<16x1xf32> to vector<16x32xf32>
    %120 = arith.mulf %118, %119 : vector<16x32xf32>
    %cst_45 = arith.constant dense<0.000000e+00> : vector<16x32xf32>
    %121 = tpu.matmul %120, %6, %cst_45 {dimension_numbers = #tpu.dot_dimension_numbers<[1], [0], [0], [1], [0, 0, 1, 1], [], []>} : vector<16x32xf32>, vector<32x32xf32>, vector<16x32xf32> -> vector<16x32xf32>
    %cst_46 = arith.constant dense<0.000000e+00> : vector<16x32xf32>
    %122 = tpu.matmul %1, %7, %cst_46 {dimension_numbers = #tpu.dot_dimension_numbers<[1], [0], [0], [1], [0, 0, 1, 1], [], []>} : vector<16x32xf32>, vector<32x32xf32>, vector<16x32xf32> -> vector<16x32xf32>
    %cst_47 = arith.constant dense<0.000000e+00> : vector<16x32xf32>
    %123 = tpu.matmul %1, %8, %cst_47 {dimension_numbers = #tpu.dot_dimension_numbers<[1], [0], [0], [1], [0, 0, 1, 1], [], []>} : vector<16x32xf32>, vector<32x32xf32>, vector<16x32xf32> -> vector<16x32xf32>
    %124 = vector.shape_cast %122 : vector<16x32xf32> to vector<2x8x32xf32>
    %125 = tpu.concatenate %124, %124, %124, %124 in 1 : vector<2x8x32xf32>, vector<2x8x32xf32>, vector<2x8x32xf32>, vector<2x8x32xf32> -> vector<2x32x32xf32>
    %126 = vector.shape_cast %25 : vector<32x32xf32> to vector<1x32x32xf32>
    %127 = vector.broadcast %126 : vector<1x32x32xf32> to vector<2x32x32xf32>
    %128 = arith.mulf %125, %127 : vector<2x32x32xf32>
    %129 = vector.shape_cast %123 : vector<16x32xf32> to vector<2x8x32xf32>
    %130 = tpu.concatenate %129, %129, %129, %129 in 1 : vector<2x8x32xf32>, vector<2x8x32xf32>, vector<2x8x32xf32>, vector<2x8x32xf32> -> vector<2x32x32xf32>
    %131 = vector.shape_cast %25 : vector<32x32xf32> to vector<1x32x32xf32>
    %132 = vector.broadcast %131 : vector<1x32x32xf32> to vector<2x32x32xf32>
    %133 = arith.mulf %130, %132 : vector<2x32x32xf32>
    %134 = vector.shape_cast %121 : vector<16x32xf32> to vector<2x8x32xf32>
    "tpu.trace_start"() <{level = 10 : i32, message = "bqd,bkd->bqk"}> : () -> ()
    %cst_48 = arith.constant dense<0.000000e+00> : vector<2x8x32xf32>
    %135 = tpu.matmul %134, %128, %cst_48 {dimension_numbers = #tpu.dot_dimension_numbers<[2], [2], [1], [1], [0, 0, 0, 1, 1, 1], [0], [0]>} : vector<2x8x32xf32>, vector<2x32x32xf32>, vector<2x8x32xf32> -> vector<2x8x32xf32>
    "tpu.trace_stop"() : () -> ()
    %136 = vector.shape_cast %135 : vector<2x8x32xf32> to vector<16x32xf32>
    %cst_49 = arith.constant 0.353553385 : f32
    %137 = vector.broadcast %cst_49 : f32 to vector<16x32xf32>
    %138 = arith.mulf %136, %137 : vector<16x32xf32>
    %139 = arith.addf %138, %50 : vector<16x32xf32>
    %cst_50 = arith.constant dense<0xFF800000> : vector<16xf32>
    %140 = vector.multi_reduction <maximumf>, %139, %cst_50 [1] : vector<16x32xf32> to vector<16xf32>
    %141 = vector.shape_cast %140 : vector<16xf32> to vector<16x1xf32>
    %142 = vector.broadcast %141 : vector<16x1xf32> to vector<16x32xf32>
    %143 = arith.subf %139, %142 : vector<16x32xf32>
    %144 = math.exp %143 : vector<16x32xf32>
    %cst_51 = arith.constant dense<0.000000e+00> : vector<16x32xf32>
    %145 = tpu.matmul %144, %38, %cst_51 {dimension_numbers = #tpu.dot_dimension_numbers<[1], [0], [0], [1], [0, 0, 1, 1], [], []>} : vector<16x32xf32>, vector<32x32xf32>, vector<16x32xf32> -> vector<16x32xf32>
    %146 = tpu.reciprocal %145 {approx = true} : vector<16x32xf32> -> vector<16x32xf32>
    %147 = arith.mulf %144, %146 : vector<16x32xf32>
    %148 = vector.shape_cast %147 : vector<16x32xf32> to vector<2x8x32xf32>
    "tpu.trace_start"() <{level = 10 : i32, message = "bqk,bkd->bqd"}> : () -> ()
    %cst_52 = arith.constant dense<0.000000e+00> : vector<2x8x32xf32>
    %149 = tpu.matmul %148, %133, %cst_52 {dimension_numbers = #tpu.dot_dimension_numbers<[2], [1], [1], [2], [0, 0, 0, 1, 1, 2], [0], [0]>} : vector<2x8x32xf32>, vector<2x32x32xf32>, vector<2x8x32xf32> -> vector<2x8x32xf32>
    "tpu.trace_stop"() : () -> ()
    %150 = vector.shape_cast %149 : vector<2x8x32xf32> to vector<16x32xf32>
    %cst_53 = arith.constant dense<0.000000e+00> : vector<16x32xf32>
    %151 = tpu.matmul %150, %9, %cst_53 {dimension_numbers = #tpu.dot_dimension_numbers<[1], [0], [0], [1], [0, 0, 1, 1], [], []>} : vector<16x32xf32>, vector<32x32xf32>, vector<16x32xf32> -> vector<16x32xf32>
    %152 = arith.addf %101, %151 : vector<16x32xf32>
    %cst_54 = arith.constant dense<0.000000e+00> : vector<16xf32>
    %153 = vector.multi_reduction <add>, %152, %cst_54 [1] : vector<16x32xf32> to vector<16xf32>
    %154 = vector.shape_cast %153 : vector<16xf32> to vector<16x1xf32>
    %cst_55 = arith.constant 3.200000e+01 : f32
    %155 = vector.broadcast %cst_55 : f32 to vector<16x1xf32>
    %156 = arith.divf %154, %155 : vector<16x1xf32>
    %157 = vector.broadcast %156 : vector<16x1xf32> to vector<16x32xf32>
    %158 = arith.subf %152, %157 : vector<16x32xf32>
    %159 = arith.mulf %158, %158 : vector<16x32xf32>
    %cst_56 = arith.constant dense<0.000000e+00> : vector<16xf32>
    %160 = vector.multi_reduction <add>, %159, %cst_56 [1] : vector<16x32xf32> to vector<16xf32>
    %161 = vector.shape_cast %160 : vector<16xf32> to vector<16x1xf32>
    %cst_57 = arith.constant 0.0322580636 : f32
    %162 = vector.broadcast %cst_57 : f32 to vector<16x1xf32>
    %163 = arith.mulf %161, %162 : vector<16x1xf32>
    %164 = math.sqrt %163 : vector<16x1xf32>
    %cst_58 = arith.constant 9.99999997E-7 : f32
    %165 = vector.broadcast %cst_58 : f32 to vector<16x1xf32>
    %166 = arith.addf %164, %165 : vector<16x1xf32>
    %167 = tpu.reciprocal %166 : vector<16x1xf32> -> vector<16x1xf32>
    %168 = vector.broadcast %156 : vector<16x1xf32> to vector<16x32xf32>
    %169 = arith.subf %152, %168 : vector<16x32xf32>
    %170 = vector.broadcast %167 : vector<16x1xf32> to vector<16x32xf32>
    %171 = arith.mulf %169, %170 : vector<16x32xf32>
    %cst_59 = arith.constant dense<0.000000e+00> : vector<16x64xf32>
    %172 = tpu.matmul %171, %10, %cst_59 {dimension_numbers = #tpu.dot_dimension_numbers<[1], [0], [0], [1], [0, 0, 1, 1], [], []>} : vector<16x32xf32>, vector<32x64xf32>, vector<16x64xf32> -> vector<16x64xf32>
    %173 = vector.broadcast %12 : vector<1x64xf32> to vector<16x64xf32>
    %174 = arith.addf %172, %173 : vector<16x64xf32>
    %cst_60 = arith.constant 0.000000e+00 : f32
    %175 = vector.broadcast %cst_60 : f32 to vector<16x64xf32>
    %176 = arith.maximumf %174, %175 : vector<16x64xf32>
    %c0_61 = arith.constant 0 : index
    %c0_62 = arith.constant 0 : index
    %177 = vector.load %arg3[%c0_61, %c0_62] : memref<64x32xf32, #tpu.memory_space<vmem>>, vector<64x32xf32>
    %cst_63 = arith.constant dense<0.000000e+00> : vector<16x32xf32>
    %178 = tpu.matmul %176, %177, %cst_63 {dimension_numbers = #tpu.dot_dimension_numbers<[1], [0], [0], [1], [0, 0, 1, 1], [], []>} : vector<16x64xf32>, vector<64x32xf32>, vector<16x32xf32> -> vector<16x32xf32>
    %179 = arith.addf %152, %178 : vector<16x32xf32>
    %180 = vector.broadcast %11 : vector<1x32xf32> to vector<16x32xf32>
    %181 = arith.addf %179, %180 : vector<16x32xf32>
    %cst_64 = arith.constant 0.000000e+00 : f32
    %182 = vector.broadcast %cst_64 : f32 to vector<16x96xf32>
    %183 = tpu.concatenate %181, %182 in 1 : vector<16x32xf32>, vector<16x96xf32> -> vector<16x128xf32>
    %c0_65 = arith.constant 0 : index
    %c0_66 = arith.constant 0 : index
    %184 = vector.load %arg4[%c0_65, %c0_66] : memref<16x128xf32, #tpu.memory_space<vmem>>, vector<16x128xf32>
    tpu.vector_store %arg4[%c0_65, %c0_66], %183 {strides = array<i32>} : memref<16x128xf32, #tpu.memory_space<vmem>>, vector<16x128xf32>,
    return
  }
}

</mosaic_0001>

<llo_original>
// kernel: tpu_custom_call.1
$region0: #{tpu_custom_call.1}
  #allocation0 [shape = 'u32[]', space=smem, size = 0x4, offset = 0x4, fixed_abs, tag = 'smem constant byte address 0x4 - core index']
  #allocation1 [shape = 'u32[144,128]{1,0:T(1,128)}', space=vmem, size = 0x12000, scoped, tag = 'internal scratch']
  %s0 = inlined_call_operand.vmem [shape: f32[32,32], index: 0, kind: input, shape index: {}]
  %s1 = inlined_call_operand.vmem [shape: f32[16,16], index: 1, kind: input, shape index: {}]
  %s2 = inlined_call_operand.hbm [shape: f32[40,320], index: 2, kind: input, shape index: {}]
  %s3 = inlined_call_operand.vmem [shape: f32[64,32], index: 3, kind: input, shape index: {}]
  %s4 = inlined_call_operand.hbm [shape: f32[16,128], index: 4, kind: output, shape index: {}]
  %s5 = sld [smem:[#allocation0]]
  $region30: #{tpu_custom_call.1} parent=0
    _
  %s7 = ssub.s32 1, %s5
  %s8 = scalar_select 0, %s7, %s5
  $region1: #{tpu_custom_call.1} parent=0
    #allocation2 [shape = 'u8[61440]{0}', space=vmem, size = 0xf000, scoped, tag = 'input window, operand 2, single buffered']
    #allocation3 [shape = 's32[1]{0}', space=sflag, size = 0x4, scoped, tag = 'scoped memory for tpu_custom_call.1']
    #allocation4 [shape = 's32[1]{0}', space=sflag, size = 0x4, scoped, tag = 'scoped memory for tpu_custom_call.1']
    #allocation5 [shape = 'u8[8192]{0}', space=vmem, size = 0x2000, scoped, tag = 'output window, operand 0, single buffered']
    %9 = vsyncpa [#allocation3], 0
    %10 = vsyncpa [#allocation4], 0
    // Predicated region
    $region2: #{tpu_custom_call.1} parent=1 // pred_check
      _
    $region3: #{tpu_custom_call.1} parent=1 // pred_check_branch
      %12 = sbr.rel (0) target = $region5
    $region4: #{tpu_custom_call.1} parent=1 // pred_region
      _
    $region5: #{tpu_custom_call.1} parent=1 // pred_fallthru
      _
    // Predicated region
    $region6: #{tpu_custom_call.1} parent=1 // pred_check
      _
    $region7: #{tpu_custom_call.1} parent=1 // pred_check_branch
      %14 = sbr.rel (0) target = $region9
    $region8: #{tpu_custom_call.1} parent=1 // pred_region
      _
    $region9: #{tpu_custom_call.1} parent=1 // pred_fallthru
      _
    // Predicated region
    $region10: #{tpu_custom_call.1} parent=1 // pred_check
      _
    $region11: #{tpu_custom_call.1} parent=1 // pred_check_branch
      %16 = sbr.rel (0) target = $region13
    $region12: #{tpu_custom_call.1} parent=1 // pred_region
      %s18 = ssub.s32 1920, 1920
      %19 = vsyncadd [#allocation3], %s18
      %s20 = sshll.u32 [#allocation2], 4
      %s21 = int_to_ptr.vmem [resolvable:$true] %s20
      %26 = dma.hbm_to_vmem [thread:$0]  %s2, 1920, %s21, [#allocation3], 384, 384, 24
    $region13: #{tpu_custom_call.1} parent=1 // pred_fallthru
      _
    // Predicated region
    $region14: #{tpu_custom_call.1} parent=1 // pred_check
      _
    $region15: #{tpu_custom_call.1} parent=1 // pred_check_branch
      %28 = sbr.rel (0) target = $region17
    $region16: #{tpu_custom_call.1} parent=1 // pred_region
      _
    $region17: #{tpu_custom_call.1} parent=1 // pred_fallthru
      _
    // Predicated region
    $region18: #{tpu_custom_call.1} parent=1 // pred_check
      _
    $region19: #{tpu_custom_call.1} parent=1 // pred_check_branch
      %30 = sbr.rel (0) target = $region21
    $region20: #{tpu_custom_call.1} parent=1 // pred_region
      %31 = dma.done [#allocation3], 1920
    $region21: #{tpu_custom_call.1} parent=1 // pred_fallthru
      _
    %v32 = vld [vmem:[%s0] sm:$0xff]
    %v33 = vld [vmem:[%s0 + $0x8] sm:$0xff]
    %v34 = vld [vmem:[%s0 + $0x10] sm:$0xff]
    %v35 = vld [vmem:[%s0 + $0x18] sm:$0xff]
    %v36 = vld [vmem:[#allocation2] sm:$0xff]
    %v37 = vld [vmem:[#allocation2 + $0x18] sm:$0xff]
    %v38 = vld [vmem:[#allocation2 + $0x30] sm:$0xff]
    %v39 = vld [vmem:[#allocation2 + $0x48] sm:$0xff]
    %v40 = vld [vmem:[#allocation2 + $0x8] sm:$0xff]
    %v41 = vld [vmem:[#allocation2 + $0x20] sm:$0xff]
    %v42 = vld [vmem:[#allocation2 + $0x38] sm:$0xff]
    %v43 = vld [vmem:[#allocation2 + $0x50] sm:$0xff]
    %v44 = vld [vmem:[#allocation2 + $0x10] sm:$0xff]
    %v45 = vld [vmem:[#allocation2 + $0x28] sm:$0xff]
    %v46 = vld [vmem:[#allocation2 + $0x40] sm:$0xff]
    %v47 = vld [vmem:[#allocation2 + $0x58] sm:$0xff]
    %v48 = vld [vmem:[#allocation2 + $0x60] ss:$0 sm:$0xff]
    %v49 = vld [vmem:[#allocation2 + $0x70] ss:$0 sm:$0xff]
    %v50 = vlaneseq
    %v51 = vshrl.u32 %v50, 7
    %v52 = vadd.s32 %v51, 8
    %v53 = vadd.s32 %v51, 16
    %v54 = vadd.s32 %v51, 24
    %v55 = vcvt.s32.f32 %v51
    %v56 = vcvt.s32.f32 %v52
    %v57 = vcvt.s32.f32 %v53
    %v58 = vcvt.s32.f32 %v54
    %v59 = vlaneseq
    %v60 = vand.u32 %v59, 127
    %v61 = vcvt.s32.f32 %v60
    %v62 = vmul.f32 %v55, 0.125
    %v63 = vmul.f32 %v56, 0.125
    %v64 = vmul.f32 %v57, 0.125
    %v65 = vmul.f32 %v58, 0.125
    %v66 = vfloor.f32 %v62
    %v67 = vfloor.f32 %v63
    %v68 = vfloor.f32 %v64
    %v69 = vfloor.f32 %v65
    %v70 = vmul.f32 %v61, 0.125
    %v71 = vfloor.f32 %v70
    %vm72 = vcmp.eq.f32.partialorder %v66, %v71
    %vm73 = vcmp.eq.f32.partialorder %v67, %v71
    %vm74 = vcmp.eq.f32.partialorder %v68, %v71
    %vm75 = vcmp.eq.f32.partialorder %v69, %v71
    %v76 = vsel %vm72, 1, 0
    %v77 = vsel %vm73, 1, 0
    %v78 = vsel %vm74, 1, 0
    %v79 = vsel %vm75, 1, 0
    %v80 = vcvt.s32.f32 %v76
    %v81 = vcvt.s32.f32 %v77
    %v82 = vcvt.s32.f32 %v78
    %v83 = vcvt.s32.f32 %v79
    %v84 = vld [vmem:[%s1] sm:$0xff]
    %v85 = vld [vmem:[%s1 + $0x8] sm:$0xff]
    %v86 = vsub.f32 %v84, 1.0
    %v87 = vsub.f32 %v85, 1.0
    %v88 = vmul.f32 %v86, 1e+09
    %v89 = vmul.f32 %v87, 1e+09
    %92 = vrot.lane.b32.xlu0 %v88, 8
    %v93 = vpop.permute.xlu0 %92
    %94 = vrot.lane.b32.xlu0 %v89, 8
    %v95 = vpop.permute.xlu0 %94
    %98 = vrot.lane.b32.xlu0 %v88, 16
    %v99 = vpop.permute.xlu0 %98
    %100 = vrot.lane.b32.xlu0 %v89, 16
    %v101 = vpop.permute.xlu0 %100
    %104 = vrot.lane.b32.xlu0 %v88, 24
    %v105 = vpop.permute.xlu0 %104
    %106 = vrot.lane.b32.xlu0 %v89, 24
    %v107 = vpop.permute.xlu0 %106
    %vm110 = vcmask 64512
    %v111 = vsel %vm110, %v88, %v93
    %v112 = vsel %vm110, %v89, %v95
    %vm113 = vcmask 130048
    %v114 = vsel %vm113, %v111, %v99
    %v115 = vsel %vm113, %v112, %v101
    %vm116 = vcmask 195584
    %v117 = vsel %vm116, %v114, %v105
    %v118 = vsel %vm116, %v115, %v107
    %119 = vrot.lane.b32.xlu0 %v88, 120
    %v120 = vpop.permute.xlu0 %119
    %121 = vrot.lane.b32.xlu0 %v89, 120
    %v122 = vpop.permute.xlu0 %121
    %v125 = vsel %vm110, %v120, %v88
    %v126 = vsel %vm110, %v122, %v89
    %v127 = vsel %vm113, %v125, %v93
    %v128 = vsel %vm113, %v126, %v95
    %v129 = vsel %vm116, %v127, %v99
    %v130 = vsel %vm116, %v128, %v101
    %vm131 = vcmask 261120
    %v132 = vsel %vm131, %v32, 0.0
    %133 = vadd.xlane.f32.xlu0 %v132
    %v134 = vpop.xlane.xlu0 %133
    %v135 = vsel %vm131, %v33, 0.0
    %136 = vadd.xlane.f32.xlu0 %v135
    %v137 = vpop.xlane.xlu0 %136
    %v138 = vrcp.pop 32.0
    %v139 = vmul.f32 %v134, %v138
    %v140 = vmul.f32 %v137, %v138
    %v141 = vsub.f32 %v32, %v139
    %v142 = vsub.f32 %v33, %v140
    %v143 = vmul.f32 %v141, %v141
    %v144 = vmul.f32 %v142, %v142
    %v145 = vsel %vm131, %v143, 0.0
    %146 = vadd.xlane.f32.xlu0 %v145
    %v147 = vpop.xlane.xlu0 %146
    %v148 = vsel %vm131, %v144, 0.0
    %149 = vadd.xlane.f32.xlu0 %v148
    %v150 = vpop.xlane.xlu0 %149
    %v151 = vmul.f32 %v147, 0.032258064
    %v152 = vmul.f32 %v150, 0.032258064
    %v153 = vrsqrt.pop %v151
    %v154 = vmul.f32 %v151, %v153
    %vm155 = vcmp.eq.f32.partialorder %v151, inf
    %v156 = vsel %vm155, %v151, %v154
    %vm157 = vcmp.eq.f32.partialorder %v151, 0.0
    %v158 = vand.u32 %v151, 2147483648
    %v159 = vsel %vm157, %v158, %v156
    %v160 = vrsqrt.pop %v152
    %v161 = vmul.f32 %v152, %v160
    %vm162 = vcmp.eq.f32.partialorder %v152, inf
    %v163 = vsel %vm162, %v152, %v161
    %vm164 = vcmp.eq.f32.partialorder %v152, 0.0
    %v165 = vand.u32 %v152, 2147483648
    %v166 = vsel %vm164, %v165, %v163
    %v167 = vadd.f32 %v159, 1e-06
    %v168 = vadd.f32 %v166, 1e-06
    %v169 = vrcp.pop %v167
    %v170 = vrcp.pop %v168
    %v171 = vmul.f32 %v141, %v169
    %v172 = vmul.f32 %v142, %v170
    %v174 = vsel %vm131, %v171, 0
    %v177 = vsel %vm131, %v172, 0
    %179 = vmatprep.subr.mxu0 0.0
    %180 = vmatpush1.msra.mxu0 %v36
    %181 = vmatprep.subr.mxu0 0.0
    %182 = vmatpush1.msra.mxu0 %v37
    %183 = vmatprep.subr.mxu0 0.0
    %184 = vmatpush1.msra.mxu0 %v38
    %185 = vmatprep.subr.mxu0 0.0
    %186 = vmatpush1.msra.mxu0 %v39
    %187 = vmatprep.subr.mxu0 0.0
    %188 = vmatpush1.msra.mxu0 0.0
    %189 = vmatprep.subr.mxu0 0.0
    %190 = vmatpush1.msra.mxu0 0.0
    %191 = vmatprep.subr.mxu0 0.0
    %192 = vmatpush1.msra.mxu0 0.0
    %193 = vmatprep.subr.mxu0 0.0
    %194 = vmatpush1.msra.mxu0 0.0
    %195 = vmatprep.subr.mxu0 0.0
    %196 = vmatpush1.msra.mxu0 0.0
    %197 = vmatprep.subr.mxu0 0.0
    %198 = vmatpush1.msra.mxu0 0.0
    %199 = vmatprep.subr.mxu0 0.0
    %200 = vmatpush1.msra.mxu0 0.0
    %201 = vmatprep.subr.mxu0 0.0
    %202 = vmatpush1.msra.mxu0 0.0
    %203 = vmatprep.subr.mxu0 0.0
    %204 = vmatpush1.msra.mxu0 0.0
    %205 = vmatprep.subr.mxu0 0.0
    %206 = vmatpush1.msra.mxu0 0.0
    %207 = vmatprep.subr.mxu0 0.0
    %208 = vmatpush1.msra.mxu0 0.0
    %209 = vmatprep.subr.mxu0 0.0
    %210 = vmatpush1.msra.mxu0 0.0
    %211 = vmatprep.subr.mxu0 0.0
    %212 = vmatpush1.msra.mxu0 0.0
    %213 = vmatprep.subr.mxu0 0.0
    %214 = vmatpush1.msra.mxu0 0.0
    %215 = vmatprep.subr.mxu0 0.0
    %216 = vmatpush1.msra.mxu0 0.0
    %217 = vmatprep.subr.mxu0 0.0
    %218 = vmatpush1.msra.mxu0 0.0
    %219 = vmatprep.subr.mxu0 0.0
    %220 = vmatpush1.msra.mxu0 0.0
    %221 = vmatprep.subr.mxu0 0.0
    %222 = vmatpush1.msra.mxu0 0.0
    %223 = vmatprep.subr.mxu0 0.0
    %224 = vmatpush1.msra.mxu0 0.0
    %225 = vmatprep.subr.mxu0 0.0
    %226 = vmatpush1.msra.mxu0 0.0
    %227 = vmatprep.subr.mxu0 0.0
    %228 = vmatpush1.msra.mxu0 0.0
    %229 = vmatprep.subr.mxu0 0.0
    %230 = vmatpush1.msra.mxu0 0.0
    %231 = vmatprep.subr.mxu0 0.0
    %232 = vmatpush1.msra.mxu0 0.0
    %233 = vmatprep.subr.mxu0 0.0
    %234 = vmatpush1.msra.mxu0 0.0
    %235 = vmatprep.subr.mxu0 0.0
    %236 = vmatpush1.msra.mxu0 0.0
    %237 = vmatprep.subr.mxu0 0.0
    %238 = vmatpush1.msra.mxu0 0.0
    %239 = vmatprep.subr.mxu0 0.0
    %240 = vmatpush1.msra.mxu0 0.0
    %241 = vmatprep.subr.mxu0 0.0
    %242 = vmatpush1.msra.mxu0 0.0
    %243 = vmatprep.mubr.f32.mxu0 0.0
    %244 = vmatmul.mubr.f32.gmra.mrb[0].mxu0 %v174
    %v245 = vpop.f32.mrb[0].mxu0
    %v246 = vadd.f32 0.0, %v245
    %v247 = vpop.f32.mrb[0].mxu0
    %248 = vmatprep.mubr.f32.mxu0 0.0
    %249 = vmatmul.mubr.f32.gmra.mrb[0].mxu0 %v177
    %v250 = vpop.f32.mrb[0].mxu0
    %v251 = vadd.f32 0.0, %v250
    %v252 = vpop.f32.mrb[0].mxu0
    %253 = vdwg.mxu0
    %258 = vrot.lane.b32.xlu0 %v36, 96
    %v259 = vpop.permute.xlu0 %258
    %260 = vrot.lane.b32.xlu0 %v37, 96
    %v261 = vpop.permute.xlu0 %260
    %262 = vrot.lane.b32.xlu0 %v38, 96
    %v263 = vpop.permute.xlu0 %262
    %264 = vrot.lane.b32.xlu0 %v39, 96
    %v265 = vpop.permute.xlu0 %264
    %270 = vmatprep.subr.mxu0 0.0
    %271 = vmatpush1.msra.mxu0 %v259
    %272 = vmatprep.subr.mxu0 0.0
    %273 = vmatpush1.msra.mxu0 %v261
    %274 = vmatprep.subr.mxu0 0.0
    %275 = vmatpush1.msra.mxu0 %v263
    %276 = vmatprep.subr.mxu0 0.0
    %277 = vmatpush1.msra.mxu0 %v265
    %278 = vmatprep.subr.mxu0 0.0
    %279 = vmatpush1.msra.mxu0 0.0
    %280 = vmatprep.subr.mxu0 0.0
    %281 = vmatpush1.msra.mxu0 0.0
    %282 = vmatprep.subr.mxu0 0.0
    %283 = vmatpush1.msra.mxu0 0.0
    %284 = vmatprep.subr.mxu0 0.0
    %285 = vmatpush1.msra.mxu0 0.0
    %286 = vmatprep.subr.mxu0 0.0
    %287 = vmatpush1.msra.mxu0 0.0
    %288 = vmatprep.subr.mxu0 0.0
    %289 = vmatpush1.msra.mxu0 0.0
    %290 = vmatprep.subr.mxu0 0.0
    %291 = vmatpush1.msra.mxu0 0.0
    %292 = vmatprep.subr.mxu0 0.0
    %293 = vmatpush1.msra.mxu0 0.0
    %294 = vmatprep.subr.mxu0 0.0
    %295 = vmatpush1.msra.mxu0 0.0
    %296 = vmatprep.subr.mxu0 0.0
    %297 = vmatpush1.msra.mxu0 0.0
    %298 = vmatprep.subr.mxu0 0.0
    %299 = vmatpush1.msra.mxu0 0.0
    %300 = vmatprep.subr.mxu0 0.0
    %301 = vmatpush1.msra.mxu0 0.0
    %302 = vmatprep.subr.mxu0 0.0
    %303 = vmatpush1.msra.mxu0 0.0
    %304 = vmatprep.subr.mxu0 0.0
    %305 = vmatpush1.msra.mxu0 0.0
    %306 = vmatprep.subr.mxu0 0.0
    %307 = vmatpush1.msra.mxu0 0.0
    %308 = vmatprep.subr.mxu0 0.0
    %309 = vmatpush1.msra.mxu0 0.0
    %310 = vmatprep.subr.mxu0 0.0
    %311 = vmatpush1.msra.mxu0 0.0
    %312 = vmatprep.subr.mxu0 0.0
    %313 = vmatpush1.msra.mxu0 0.0
    %314 = vmatprep.subr.mxu0 0.0
    %315 = vmatpush1.msra.mxu0 0.0
    %316 = vmatprep.subr.mxu0 0.0
    %317 = vmatpush1.msra.mxu0 0.0
    %318 = vmatprep.subr.mxu0 0.0
    %319 = vmatpush1.msra.mxu0 0.0
    %320 = vmatprep.subr.mxu0 0.0
    %321 = vmatpush1.msra.mxu0 0.0
    %322 = vmatprep.subr.mxu0 0.0
    %323 = vmatpush1.msra.mxu0 0.0
    %324 = vmatprep.subr.mxu0 0.0
    %325 = vmatpush1.msra.mxu0 0.0
    %326 = vmatprep.subr.mxu0 0.0
    %327 = vmatpush1.msra.mxu0 0.0
    %328 = vmatprep.subr.mxu0 0.0
    %329 = vmatpush1.msra.mxu0 0.0
    %330 = vmatprep.subr.mxu0 0.0
    %331 = vmatpush1.msra.mxu0 0.0
    %332 = vmatprep.subr.mxu0 0.0
    %333 = vmatpush1.msra.mxu0 0.0
    %334 = vmatprep.mubr.f32.mxu0 0.0
    %335 = vmatmul.mubr.f32.gmra.mrb[0].mxu0 %v174
    %v336 = vpop.f32.mrb[0].mxu0
    %v337 = vadd.f32 0.0, %v336
    %v338 = vpop.f32.mrb[0].mxu0
    %339 = vmatprep.mubr.f32.mxu0 0.0
    %340 = vmatmul.mubr.f32.gmra.mrb[0].mxu0 %v177
    %v341 = vpop.f32.mrb[0].mxu0
    %v342 = vadd.f32 0.0, %v341
    %v343 = vpop.f32.mrb[0].mxu0
    %344 = vdwg.mxu0
    %345 = vrot.lane.b32.xlu0 %v36, 64
    %v346 = vpop.permute.xlu0 %345
    %347 = vrot.lane.b32.xlu0 %v37, 64
    %v348 = vpop.permute.xlu0 %347
    %349 = vrot.lane.b32.xlu0 %v38, 64
    %v350 = vpop.permute.xlu0 %349
    %351 = vrot.lane.b32.xlu0 %v39, 64
    %v352 = vpop.permute.xlu0 %351
    %357 = vmatprep.subr.mxu0 0.0
    %358 = vmatpush1.msra.mxu0 %v346
    %359 = vmatprep.subr.mxu0 0.0
    %360 = vmatpush1.msra.mxu0 %v348
    %361 = vmatprep.subr.mxu0 0.0
    %362 = vmatpush1.msra.mxu0 %v350
    %363 = vmatprep.subr.mxu0 0.0
    %364 = vmatpush1.msra.mxu0 %v352
    %365 = vmatprep.subr.mxu0 0.0
    %366 = vmatpush1.msra.mxu0 0.0
    %367 = vmatprep.subr.mxu0 0.0
    %368 = vmatpush1.msra.mxu0 0.0
    %369 = vmatprep.subr.mxu0 0.0
    %370 = vmatpush1.msra.mxu0 0.0
    %371 = vmatprep.subr.mxu0 0.0
    %372 = vmatpush1.msra.mxu0 0.0
    %373 = vmatprep.subr.mxu0 0.0
    %374 = vmatpush1.msra.mxu0 0.0
    %375 = vmatprep.subr.mxu0 0.0
    %376 = vmatpush1.msra.mxu0 0.0
    %377 = vmatprep.subr.mxu0 0.0
    %378 = vmatpush1.msra.mxu0 0.0
    %379 = vmatprep.subr.mxu0 0.0
    %380 = vmatpush1.msra.mxu0 0.0
    %381 = vmatprep.subr.mxu0 0.0
    %382 = vmatpush1.msra.mxu0 0.0
    %383 = vmatprep.subr.mxu0 0.0
    %384 = vmatpush1.msra.mxu0 0.0
    %385 = vmatprep.subr.mxu0 0.0
    %386 = vmatpush1.msra.mxu0 0.0
    %387 = vmatprep.subr.mxu0 0.0
    %388 = vmatpush1.msra.mxu0 0.0
    %389 = vmatprep.subr.mxu0 0.0
    %390 = vmatpush1.msra.mxu0 0.0
    %391 = vmatprep.subr.mxu0 0.0
    %392 = vmatpush1.msra.mxu0 0.0
    %393 = vmatprep.subr.mxu0 0.0
    %394 = vmatpush1.msra.mxu0 0.0
    %395 = vmatprep.subr.mxu0 0.0
    %396 = vmatpush1.msra.mxu0 0.0
    %397 = vmatprep.subr.mxu0 0.0
    %398 = vmatpush1.msra.mxu0 0.0
    %399 = vmatprep.subr.mxu0 0.0
    %400 = vmatpush1.msra.mxu0 0.0
    %401 = vmatprep.subr.mxu0 0.0
    %402 = vmatpush1.msra.mxu0 0.0
    %403 = vmatprep.subr.mxu0 0.0
    %404 = vmatpush1.msra.mxu0 0.0
    %405 = vmatprep.subr.mxu0 0.0
    %406 = vmatpush1.msra.mxu0 0.0
    %407 = vmatprep.subr.mxu0 0.0
    %408 = vmatpush1.msra.mxu0 0.0
    %409 = vmatprep.subr.mxu0 0.0
    %410 = vmatpush1.msra.mxu0 0.0
    %411 = vmatprep.subr.mxu0 0.0
    %412 = vmatpush1.msra.mxu0 0.0
    %413 = vmatprep.subr.mxu0 0.0
    %414 = vmatpush1.msra.mxu0 0.0
    %415 = vmatprep.subr.mxu0 0.0
    %416 = vmatpush1.msra.mxu0 0.0
    %417 = vmatprep.subr.mxu0 0.0
    %418 = vmatpush1.msra.mxu0 0.0
    %419 = vmatprep.subr.mxu0 0.0
    %420 = vmatpush1.msra.mxu0 0.0
    %421 = vmatprep.mubr.f32.mxu0 0.0
    %422 = vmatmul.mubr.f32.gmra.mrb[0].mxu0 %v174
    %v423 = vpop.f32.mrb[0].mxu0
    %v424 = vadd.f32 0.0, %v423
    %v425 = vpop.f32.mrb[0].mxu0
    %426 = vmatprep.mubr.f32.mxu0 0.0
    %427 = vmatmul.mubr.f32.gmra.mrb[0].mxu0 %v177
    %v428 = vpop.f32.mrb[0].mxu0
    %v429 = vadd.f32 0.0, %v428
    %v430 = vpop.f32.mrb[0].mxu0
    %431 = vdwg.mxu0
    %v432 = vmul.f32 %v337, %v80
    %v433 = vmul.f32 %v337, %v81
    %v434 = vmul.f32 %v337, %v82
    %v435 = vmul.f32 %v337, %v83
    %v436 = vmul.f32 %v342, %v80
    %v437 = vmul.f32 %v342, %v81
    %v438 = vmul.f32 %v342, %v82
    %v439 = vmul.f32 %v342, %v83
    %v440 = vmul.f32 %v424, %v80
    %v441 = vmul.f32 %v424, %v81
    %v442 = vmul.f32 %v424, %v82
    %v443 = vmul.f32 %v424, %v83
    %v444 = vmul.f32 %v429, %v80
    %v445 = vmul.f32 %v429, %v81
    %v446 = vmul.f32 %v429, %v82
    %v447 = vmul.f32 %v429, %v83
    %v449 = vsel %vm131, %v246, 0
    %v452 = vsel %vm131, %v432, 0
    %v455 = vsel %vm131, %v433, 0
    %v458 = vsel %vm131, %v434, 0
    %v461 = vsel %vm131, %v435, 0
    %463 = vmatprep.subr.mxu0 0.0
    %464 = vmatpush1.xpose.msra.mxu0 %v452
    %465 = vmatprep.subr.mxu0 0.0
    %466 = vmatpush1.xpose.msra.mxu0 %v455
    %467 = vmatprep.subr.mxu0 0.0
    %468 = vmatpush1.xpose.msra.mxu0 %v458
    %469 = vmatprep.subr.mxu0 0.0
    %470 = vmatpush1.xpose.msra.mxu0 %v461
    %471 = vmatprep.subr.mxu0 0.0
    %472 = vmatpush1.xpose.msra.mxu0 0.0
    %473 = vmatprep.subr.mxu0 0.0
    %474 = vmatpush1.xpose.msra.mxu0 0.0
    %475 = vmatprep.subr.mxu0 0.0
    %476 = vmatpush1.xpose.msra.mxu0 0.0
    %477 = vmatprep.subr.mxu0 0.0
    %478 = vmatpush1.xpose.msra.mxu0 0.0
    %479 = vmatprep.subr.mxu0 0.0
    %480 = vmatpush1.xpose.msra.mxu0 0.0
    %481 = vmatprep.subr.mxu0 0.0
    %482 = vmatpush1.xpose.msra.mxu0 0.0
    %483 = vmatprep.subr.mxu0 0.0
    %484 = vmatpush1.xpose.msra.mxu0 0.0
    %485 = vmatprep.subr.mxu0 0.0
    %486 = vmatpush1.xpose.msra.mxu0 0.0
    %487 = vmatprep.subr.mxu0 0.0
    %488 = vmatpush1.xpose.msra.mxu0 0.0
    %489 = vmatprep.subr.mxu0 0.0
    %490 = vmatpush1.xpose.msra.mxu0 0.0
    %491 = vmatprep.subr.mxu0 0.0
    %492 = vmatpush1.xpose.msra.mxu0 0.0
    %493 = vmatprep.subr.mxu0 0.0
    %494 = vmatpush1.xpose.msra.mxu0 0.0
    %495 = vmatprep.subr.mxu0 0.0
    %496 = vmatpush1.xpose.msra.mxu0 0.0
    %497 = vmatprep.subr.mxu0 0.0
    %498 = vmatpush1.xpose.msra.mxu0 0.0
    %499 = vmatprep.subr.mxu0 0.0
    %500 = vmatpush1.xpose.msra.mxu0 0.0
    %501 = vmatprep.subr.mxu0 0.0
    %502 = vmatpush1.xpose.msra.mxu0 0.0
    %503 = vmatprep.subr.mxu0 0.0
    %504 = vmatpush1.xpose.msra.mxu0 0.0
    %505 = vmatprep.subr.mxu0 0.0
    %506 = vmatpush1.xpose.msra.mxu0 0.0
    %507 = vmatprep.subr.mxu0 0.0
    %508 = vmatpush1.xpose.msra.mxu0 0.0
    %509 = vmatprep.subr.mxu0 0.0
    %510 = vmatpush1.xpose.msra.mxu0 0.0
    %511 = vmatprep.subr.mxu0 0.0
    %512 = vmatpush1.xpose.msra.mxu0 0.0
    %513 = vmatprep.subr.mxu0 0.0
    %514 = vmatpush1.xpose.msra.mxu0 0.0
    %515 = vmatprep.subr.mxu0 0.0
    %516 = vmatpush1.xpose.msra.mxu0 0.0
    %517 = vmatprep.subr.mxu0 0.0
    %518 = vmatpush1.xpose.msra.mxu0 0.0
    %519 = vmatprep.subr.mxu0 0.0
    %520 = vmatpush1.xpose.msra.mxu0 0.0
    %521 = vmatprep.subr.mxu0 0.0
    %522 = vmatpush1.xpose.msra.mxu0 0.0
    %523 = vmatprep.subr.mxu0 0.0
    %524 = vmatpush1.xpose.msra.mxu0 0.0
    %525 = vmatprep.subr.mxu0 0.0
    %526 = vmatpush1.xpose.msra.mxu0 0.0
    %527 = vmatprep.mubr.f32.mxu0 0.0
    %528 = vmatmul.mubr.f32.gmra.mrb[0].mxu0 %v449
    %v529 = vpop.f32.mrb[0].mxu0
    %v530 = vadd.f32 0.0, %v529
    %v531 = vpop.f32.mrb[0].mxu0
    %532 = vdwg.mxu0
    %v534 = vsel %vm131, %v251, 0
    %v537 = vsel %vm131, %v436, 0
    %v540 = vsel %vm131, %v437, 0
    %v543 = vsel %vm131, %v438, 0
    %v546 = vsel %vm131, %v439, 0
    %548 = vmatprep.subr.mxu0 0.0
    %549 = vmatpush1.xpose.msra.mxu0 %v537
    %550 = vmatprep.subr.mxu0 0.0
    %551 = vmatpush1.xpose.msra.mxu0 %v540
    %552 = vmatprep.subr.mxu0 0.0
    %553 = vmatpush1.xpose.msra.mxu0 %v543
    %554 = vmatprep.subr.mxu0 0.0
    %555 = vmatpush1.xpose.msra.mxu0 %v546
    %556 = vmatprep.subr.mxu0 0.0
    %557 = vmatpush1.xpose.msra.mxu0 0.0
    %558 = vmatprep.subr.mxu0 0.0
    %559 = vmatpush1.xpose.msra.mxu0 0.0
    %560 = vmatprep.subr.mxu0 0.0
    %561 = vmatpush1.xpose.msra.mxu0 0.0
    %562 = vmatprep.subr.mxu0 0.0
    %563 = vmatpush1.xpose.msra.mxu0 0.0
    %564 = vmatprep.subr.mxu0 0.0
    %565 = vmatpush1.xpose.msra.mxu0 0.0
    %566 = vmatprep.subr.mxu0 0.0
    %567 = vmatpush1.xpose.msra.mxu0 0.0
    %568 = vmatprep.subr.mxu0 0.0
    %569 = vmatpush1.xpose.msra.mxu0 0.0
    %570 = vmatprep.subr.mxu0 0.0
    %571 = vmatpush1.xpose.msra.mxu0 0.0
    %572 = vmatprep.subr.mxu0 0.0
    %573 = vmatpush1.xpose.msra.mxu0 0.0
    %574 = vmatprep.subr.mxu0 0.0
    %575 = vmatpush1.xpose.msra.mxu0 0.0
    %576 = vmatprep.subr.mxu0 0.0
    %577 = vmatpush1.xpose.msra.mxu0 0.0
    %578 = vmatprep.subr.mxu0 0.0
    %579 = vmatpush1.xpose.msra.mxu0 0.0
    %580 = vmatprep.subr.mxu0 0.0
    %581 = vmatpush1.xpose.msra.mxu0 0.0
    %582 = vmatprep.subr.mxu0 0.0
    %583 = vmatpush1.xpose.msra.mxu0 0.0
    %584 = vmatprep.subr.mxu0 0.0
    %585 = vmatpush1.xpose.msra.mxu0 0.0
    %586 = vmatprep.subr.mxu0 0.0
    %587 = vmatpush1.xpose.msra.mxu0 0.0
    %588 = vmatprep.subr.mxu0 0.0
    %589 = vmatpush1.xpose.msra.mxu0 0.0
    %590 = vmatprep.subr.mxu0 0.0
    %591 = vmatpush1.xpose.msra.mxu0 0.0
    %592 = vmatprep.subr.mxu0 0.0
    %593 = vmatpush1.xpose.msra.mxu0 0.0
    %594 = vmatprep.subr.mxu0 0.0
    %595 = vmatpush1.xpose.msra.mxu0 0.0
    %596 = vmatprep.subr.mxu0 0.0
    %597 = vmatpush1.xpose.msra.mxu0 0.0
    %598 = vmatprep.subr.mxu0 0.0
    %599 = vmatpush1.xpose.msra.mxu0 0.0
    %600 = vmatprep.subr.mxu0 0.0
    %601 = vmatpush1.xpose.msra.mxu0 0.0
    %602 = vmatprep.subr.mxu0 0.0
    %603 = vmatpush1.xpose.msra.mxu0 0.0
    %604 = vmatprep.subr.mxu0 0.0
    %605 = vmatpush1.xpose.msra.mxu0 0.0
    %606 = vmatprep.subr.mxu0 0.0
    %607 = vmatpush1.xpose.msra.mxu0 0.0
    %608 = vmatprep.subr.mxu0 0.0
    %609 = vmatpush1.xpose.msra.mxu0 0.0
    %610 = vmatprep.subr.mxu0 0.0
    %611 = vmatpush1.xpose.msra.mxu0 0.0
    %612 = vmatprep.mubr.f32.mxu0 0.0
    %613 = vmatmul.mubr.f32.gmra.mrb[0].mxu0 %v534
    %v614 = vpop.f32.mrb[0].mxu0
    %v615 = vadd.f32 0.0, %v614
    %v616 = vpop.f32.mrb[0].mxu0
    %617 = vdwg.mxu0
    %v618 = vmul.f32 %v530, 0.35355338
    %v619 = vmul.f32 %v615, 0.35355338
    %v620 = vadd.f32 %v618, %v117
    %v621 = vadd.f32 %v619, %v118
    %v622 = vsel %vm131, %v620, -inf
    %623 = vmax.xlane.f32.xlu0 %v622
    %v624 = vpop.xlane.xlu0 %623
    %v625 = vsel %vm131, %v621, -inf
    %626 = vmax.xlane.f32.xlu0 %v625
    %v627 = vpop.xlane.xlu0 %626
    %v628 = vsub.f32 %v620, %v624
    %v629 = vsub.f32 %v621, %v627
    %v630 = vmul.f32 %v628, 1.442695
    %v631 = vpow.pop %v630
    %v632 = vmul.f32 %v629, 1.442695
    %v633 = vpow.pop %v632
    %v635 = vsel %vm131, %v631, 0
    %v638 = vsel %vm131, %v633, 0
    %640 = vmatprep.subr.mxu0 0.0
    %641 = vmatpush1.msra.mxu0 %v80
    %642 = vmatprep.subr.mxu0 0.0
    %643 = vmatpush1.msra.mxu0 %v81
    %644 = vmatprep.subr.mxu0 0.0
    %645 = vmatpush1.msra.mxu0 %v82
    %646 = vmatprep.subr.mxu0 0.0
    %647 = vmatpush1.msra.mxu0 %v83
    %648 = vmatprep.subr.mxu0 0.0
    %649 = vmatpush1.msra.mxu0 0.0
    %650 = vmatprep.subr.mxu0 0.0
    %651 = vmatpush1.msra.mxu0 0.0
    %652 = vmatprep.subr.mxu0 0.0
    %653 = vmatpush1.msra.mxu0 0.0
    %654 = vmatprep.subr.mxu0 0.0
    %655 = vmatpush1.msra.mxu0 0.0
    %656 = vmatprep.subr.mxu0 0.0
    %657 = vmatpush1.msra.mxu0 0.0
    %658 = vmatprep.subr.mxu0 0.0
    %659 = vmatpush1.msra.mxu0 0.0
    %660 = vmatprep.subr.mxu0 0.0
    %661 = vmatpush1.msra.mxu0 0.0
    %662 = vmatprep.subr.mxu0 0.0
    %663 = vmatpush1.msra.mxu0 0.0
    %664 = vmatprep.subr.mxu0 0.0
    %665 = vmatpush1.msra.mxu0 0.0
    %666 = vmatprep.subr.mxu0 0.0
    %667 = vmatpush1.msra.mxu0 0.0
    %668 = vmatprep.subr.mxu0 0.0
    %669 = vmatpush1.msra.mxu0 0.0
    %670 = vmatprep.subr.mxu0 0.0
    %671 = vmatpush1.msra.mxu0 0.0
    %672 = vmatprep.subr.mxu0 0.0
    %673 = vmatpush1.msra.mxu0 0.0
    %674 = vmatprep.subr.mxu0 0.0
    %675 = vmatpush1.msra.mxu0 0.0
    %676 = vmatprep.subr.mxu0 0.0
    %677 = vmatpush1.msra.mxu0 0.0
    %678 = vmatprep.subr.mxu0 0.0
    %679 = vmatpush1.msra.mxu0 0.0
    %680 = vmatprep.subr.mxu0 0.0
    %681 = vmatpush1.msra.mxu0 0.0
    %682 = vmatprep.subr.mxu0 0.0
    %683 = vmatpush1.msra.mxu0 0.0
    %684 = vmatprep.subr.mxu0 0.0
    %685 = vmatpush1.msra.mxu0 0.0
    %686 = vmatprep.subr.mxu0 0.0
    %687 = vmatpush1.msra.mxu0 0.0
    %688 = vmatprep.subr.mxu0 0.0
    %689 = vmatpush1.msra.mxu0 0.0
    %690 = vmatprep.subr.mxu0 0.0
    %691 = vmatpush1.msra.mxu0 0.0
    %692 = vmatprep.subr.mxu0 0.0
    %693 = vmatpush1.msra.mxu0 0.0
    %694 = vmatprep.subr.mxu0 0.0
    %695 = vmatpush1.msra.mxu0 0.0
    %696 = vmatprep.subr.mxu0 0.0
    %697 = vmatpush1.msra.mxu0 0.0
    %698 = vmatprep.subr.mxu0 0.0
    %699 = vmatpush1.msra.mxu0 0.0
    %700 = vmatprep.subr.mxu0 0.0
    %701 = vmatpush1.msra.mxu0 0.0
    %702 = vmatprep.subr.mxu0 0.0
    %703 = vmatpush1.msra.mxu0 0.0
    %704 = vmatprep.mubr.f32.mxu0 0.0
    %705 = vmatmul.mubr.f32.gmra.mrb[0].mxu0 %v635
    %v706 = vpop.f32.mrb[0].mxu0
    %v707 = vadd.f32 0.0, %v706
    %v708 = vpop.f32.mrb[0].mxu0
    %709 = vmatprep.mubr.f32.mxu0 0.0
    %710 = vmatmul.mubr.f32.gmra.mrb[0].mxu0 %v638
    %v711 = vpop.f32.mrb[0].mxu0
    %v712 = vadd.f32 0.0, %v711
    %v713 = vpop.f32.mrb[0].mxu0
    %714 = vdwg.mxu0
    %v715 = vrcp.pop %v707
    %v716 = vrcp.pop %v712
    %v717 = vmul.f32 %v631, %v715
    %v718 = vmul.f32 %v633, %v716
    %v720 = vsel %vm131, %v717, 0
    %722 = vmatprep.subr.mxu0 0.0
    %723 = vmatpush1.msra.mxu0 %v440
    %724 = vmatprep.subr.mxu0 0.0
    %725 = vmatpush1.msra.mxu0 %v441
    %726 = vmatprep.subr.mxu0 0.0
    %727 = vmatpush1.msra.mxu0 %v442
    %728 = vmatprep.subr.mxu0 0.0
    %729 = vmatpush1.msra.mxu0 %v443
    %730 = vmatprep.subr.mxu0 0.0
    %731 = vmatpush1.msra.mxu0 0.0
    %732 = vmatprep.subr.mxu0 0.0
    %733 = vmatpush1.msra.mxu0 0.0
    %734 = vmatprep.subr.mxu0 0.0
    %735 = vmatpush1.msra.mxu0 0.0
    %736 = vmatprep.subr.mxu0 0.0
    %737 = vmatpush1.msra.mxu0 0.0
    %738 = vmatprep.subr.mxu0 0.0
    %739 = vmatpush1.msra.mxu0 0.0
    %740 = vmatprep.subr.mxu0 0.0
    %741 = vmatpush1.msra.mxu0 0.0
    %742 = vmatprep.subr.mxu0 0.0
    %743 = vmatpush1.msra.mxu0 0.0
    %744 = vmatprep.subr.mxu0 0.0
    %745 = vmatpush1.msra.mxu0 0.0
    %746 = vmatprep.subr.mxu0 0.0
    %747 = vmatpush1.msra.mxu0 0.0
    %748 = vmatprep.subr.mxu0 0.0
    %749 = vmatpush1.msra.mxu0 0.0
    %750 = vmatprep.subr.mxu0 0.0
    %751 = vmatpush1.msra.mxu0 0.0
    %752 = vmatprep.subr.mxu0 0.0
    %753 = vmatpush1.msra.mxu0 0.0
    %754 = vmatprep.subr.mxu0 0.0
    %755 = vmatpush1.msra.mxu0 0.0
    %756 = vmatprep.subr.mxu0 0.0
    %757 = vmatpush1.msra.mxu0 0.0
    %758 = vmatprep.subr.mxu0 0.0
    %759 = vmatpush1.msra.mxu0 0.0
    %760 = vmatprep.subr.mxu0 0.0
    %761 = vmatpush1.msra.mxu0 0.0
    %762 = vmatprep.subr.mxu0 0.0
    %763 = vmatpush1.msra.mxu0 0.0
    %764 = vmatprep.subr.mxu0 0.0
    %765 = vmatpush1.msra.mxu0 0.0
    %766 = vmatprep.subr.mxu0 0.0
    %767 = vmatpush1.msra.mxu0 0.0
    %768 = vmatprep.subr.mxu0 0.0
    %769 = vmatpush1.msra.mxu0 0.0
    %770 = vmatprep.subr.mxu0 0.0
    %771 = vmatpush1.msra.mxu0 0.0
    %772 = vmatprep.subr.mxu0 0.0
    %773 = vmatpush1.msra.mxu0 0.0
    %774 = vmatprep.subr.mxu0 0.0
    %775 = vmatpush1.msra.mxu0 0.0
    %776 = vmatprep.subr.mxu0 0.0
    %777 = vmatpush1.msra.mxu0 0.0
    %778 = vmatprep.subr.mxu0 0.0
    %779 = vmatpush1.msra.mxu0 0.0
    %780 = vmatprep.subr.mxu0 0.0
    %781 = vmatpush1.msra.mxu0 0.0
    %782 = vmatprep.subr.mxu0 0.0
    %783 = vmatpush1.msra.mxu0 0.0
    %784 = vmatprep.subr.mxu0 0.0
    %785 = vmatpush1.msra.mxu0 0.0
    %786 = vmatprep.mubr.f32.mxu0 0.0
    %787 = vmatmul.mubr.f32.gmra.mrb[0].mxu0 %v720
    %v788 = vpop.f32.mrb[0].mxu0
    %v789 = vadd.f32 0.0, %v788
    %v790 = vpop.f32.mrb[0].mxu0
    %791 = vdwg.mxu0
    %v793 = vsel %vm131, %v718, 0
    %795 = vmatprep.subr.mxu0 0.0
    %796 = vmatpush1.msra.mxu0 %v444
    %797 = vmatprep.subr.mxu0 0.0
    %798 = vmatpush1.msra.mxu0 %v445
    %799 = vmatprep.subr.mxu0 0.0
    %800 = vmatpush1.msra.mxu0 %v446
    %801 = vmatprep.subr.mxu0 0.0
    %802 = vmatpush1.msra.mxu0 %v447
    %803 = vmatprep.subr.mxu0 0.0
    %804 = vmatpush1.msra.mxu0 0.0
    %805 = vmatprep.subr.mxu0 0.0
    %806 = vmatpush1.msra.mxu0 0.0
    %807 = vmatprep.subr.mxu0 0.0
    %808 = vmatpush1.msra.mxu0 0.0
    %809 = vmatprep.subr.mxu0 0.0
    %810 = vmatpush1.msra.mxu0 0.0
    %811 = vmatprep.subr.mxu0 0.0
    %812 = vmatpush1.msra.mxu0 0.0
    %813 = vmatprep.subr.mxu0 0.0
    %814 = vmatpush1.msra.mxu0 0.0
    %815 = vmatprep.subr.mxu0 0.0
    %816 = vmatpush1.msra.mxu0 0.0
    %817 = vmatprep.subr.mxu0 0.0
    %818 = vmatpush1.msra.mxu0 0.0
    %819 = vmatprep.subr.mxu0 0.0
    %820 = vmatpush1.msra.mxu0 0.0
    %821 = vmatprep.subr.mxu0 0.0
    %822 = vmatpush1.msra.mxu0 0.0
    %823 = vmatprep.subr.mxu0 0.0
    %824 = vmatpush1.msra.mxu0 0.0
    %825 = vmatprep.subr.mxu0 0.0
    %826 = vmatpush1.msra.mxu0 0.0
    %827 = vmatprep.subr.mxu0 0.0
    %828 = vmatpush1.msra.mxu0 0.0
    %829 = vmatprep.subr.mxu0 0.0
    %830 = vmatpush1.msra.mxu0 0.0
    %831 = vmatprep.subr.mxu0 0.0
    %832 = vmatpush1.msra.mxu0 0.0
    %833 = vmatprep.subr.mxu0 0.0
    %834 = vmatpush1.msra.mxu0 0.0
    %835 = vmatprep.subr.mxu0 0.0
    %836 = vmatpush1.msra.mxu0 0.0
    %837 = vmatprep.subr.mxu0 0.0
    %838 = vmatpush1.msra.mxu0 0.0
    %839 = vmatprep.subr.mxu0 0.0
    %840 = vmatpush1.msra.mxu0 0.0
    %841 = vmatprep.subr.mxu0 0.0
    %842 = vmatpush1.msra.mxu0 0.0
    %843 = vmatprep.subr.mxu0 0.0
    %844 = vmatpush1.msra.mxu0 0.0
    %845 = vmatprep.subr.mxu0 0.0
    %846 = vmatpush1.msra.mxu0 0.0
    %847 = vmatprep.subr.mxu0 0.0
    %848 = vmatpush1.msra.mxu0 0.0
    %849 = vmatprep.subr.mxu0 0.0
    %850 = vmatpush1.msra.mxu0 0.0
    %851 = vmatprep.subr.mxu0 0.0
    %852 = vmatpush1.msra.mxu0 0.0
    %853 = vmatprep.subr.mxu0 0.0
    %854 = vmatpush1.msra.mxu0 0.0
    %855 = vmatprep.subr.mxu0 0.0
    %856 = vmatpush1.msra.mxu0 0.0
    %857 = vmatprep.subr.mxu0 0.0
    %858 = vmatpush1.msra.mxu0 0.0
    %859 = vmatprep.mubr.f32.mxu0 0.0
    %860 = vmatmul.mubr.f32.gmra.mrb[0].mxu0 %v793
    %v861 = vpop.f32.mrb[0].mxu0
    %v862 = vadd.f32 0.0, %v861
    %v863 = vpop.f32.mrb[0].mxu0
    %864 = vdwg.mxu0
    %865 = vrot.lane.b32.xlu0 %v36, 32
    %v866 = vpop.permute.xlu0 %865
    %867 = vrot.lane.b32.xlu0 %v37, 32
    %v868 = vpop.permute.xlu0 %867
    %869 = vrot.lane.b32.xlu0 %v38, 32
    %v870 = vpop.permute.xlu0 %869
    %871 = vrot.lane.b32.xlu0 %v39, 32
    %v872 = vpop.permute.xlu0 %871
    %v878 = vsel %vm131, %v789, 0
    %v881 = vsel %vm131, %v862, 0
    %883 = vmatprep.subr.mxu0 0.0
    %884 = vmatpush1.msra.mxu0 %v866
    %885 = vmatprep.subr.mxu0 0.0
    %886 = vmatpush1.msra.mxu0 %v868
    %887 = vmatprep.subr.mxu0 0.0
    %888 = vmatpush1.msra.mxu0 %v870
    %889 = vmatprep.subr.mxu0 0.0
    %890 = vmatpush1.msra.mxu0 %v872
    %891 = vmatprep.subr.mxu0 0.0
    %892 = vmatpush1.msra.mxu0 0.0
    %893 = vmatprep.subr.mxu0 0.0
    %894 = vmatpush1.msra.mxu0 0.0
    %895 = vmatprep.subr.mxu0 0.0
    %896 = vmatpush1.msra.mxu0 0.0
    %897 = vmatprep.subr.mxu0 0.0
    %898 = vmatpush1.msra.mxu0 0.0
    %899 = vmatprep.subr.mxu0 0.0
    %900 = vmatpush1.msra.mxu0 0.0
    %901 = vmatprep.subr.mxu0 0.0
    %902 = vmatpush1.msra.mxu0 0.0
    %903 = vmatprep.subr.mxu0 0.0
    %904 = vmatpush1.msra.mxu0 0.0
    %905 = vmatprep.subr.mxu0 0.0
    %906 = vmatpush1.msra.mxu0 0.0
    %907 = vmatprep.subr.mxu0 0.0
    %908 = vmatpush1.msra.mxu0 0.0
    %909 = vmatprep.subr.mxu0 0.0
    %910 = vmatpush1.msra.mxu0 0.0
    %911 = vmatprep.subr.mxu0 0.0
    %912 = vmatpush1.msra.mxu0 0.0
    %913 = vmatprep.subr.mxu0 0.0
    %914 = vmatpush1.msra.mxu0 0.0
    %915 = vmatprep.subr.mxu0 0.0
    %916 = vmatpush1.msra.mxu0 0.0
    %917 = vmatprep.subr.mxu0 0.0
    %918 = vmatpush1.msra.mxu0 0.0
    %919 = vmatprep.subr.mxu0 0.0
    %920 = vmatpush1.msra.mxu0 0.0
    %921 = vmatprep.subr.mxu0 0.0
    %922 = vmatpush1.msra.mxu0 0.0
    %923 = vmatprep.subr.mxu0 0.0
    %924 = vmatpush1.msra.mxu0 0.0
    %925 = vmatprep.subr.mxu0 0.0
    %926 = vmatpush1.msra.mxu0 0.0
    %927 = vmatprep.subr.mxu0 0.0
    %928 = vmatpush1.msra.mxu0 0.0
    %929 = vmatprep.subr.mxu0 0.0
    %930 = vmatpush1.msra.mxu0 0.0
    %931 = vmatprep.subr.mxu0 0.0
    %932 = vmatpush1.msra.mxu0 0.0
    %933 = vmatprep.subr.mxu0 0.0
    %934 = vmatpush1.msra.mxu0 0.0
    %935 = vmatprep.subr.mxu0 0.0
    %936 = vmatpush1.msra.mxu0 0.0
    %937 = vmatprep.subr.mxu0 0.0
    %938 = vmatpush1.msra.mxu0 0.0
    %939 = vmatprep.subr.mxu0 0.0
    %940 = vmatpush1.msra.mxu0 0.0
    %941 = vmatprep.subr.mxu0 0.0
    %942 = vmatpush1.msra.mxu0 0.0
    %943 = vmatprep.subr.mxu0 0.0
    %944 = vmatpush1.msra.mxu0 0.0
    %945 = vmatprep.subr.mxu0 0.0
    %946 = vmatpush1.msra.mxu0 0.0
    %947 = vmatprep.mubr.f32.mxu0 0.0
    %948 = vmatmul.mubr.f32.gmra.mrb[0].mxu0 %v878
    %v949 = vpop.f32.mrb[0].mxu0
    %v950 = vadd.f32 0.0, %v949
    %v951 = vpop.f32.mrb[0].mxu0
    %952 = vmatprep.mubr.f32.mxu0 0.0
    %953 = vmatmul.mubr.f32.gmra.mrb[0].mxu0 %v881
    %v954 = vpop.f32.mrb[0].mxu0
    %v955 = vadd.f32 0.0, %v954
    %v956 = vpop.f32.mrb[0].mxu0
    %957 = vdwg.mxu0
    %v958 = vadd.f32 %v32, %v950
    %v959 = vadd.f32 %v33, %v955
    %v960 = vsel %vm131, %v958, 0.0
    %961 = vadd.xlane.f32.xlu0 %v960
    %v962 = vpop.xlane.xlu0 %961
    %v963 = vsel %vm131, %v959, 0.0
    %964 = vadd.xlane.f32.xlu0 %v963
    %v965 = vpop.xlane.xlu0 %964
    %v966 = vmul.f32 %v962, %v138
    %v967 = vmul.f32 %v965, %v138
    %v968 = vsub.f32 %v958, %v966
    %v969 = vsub.f32 %v959, %v967
    %v970 = vmul.f32 %v968, %v968
    %v971 = vmul.f32 %v969, %v969
    %v972 = vsel %vm131, %v970, 0.0
    %973 = vadd.xlane.f32.xlu0 %v972
    %v974 = vpop.xlane.xlu0 %973
    %v975 = vsel %vm131, %v971, 0.0
    %976 = vadd.xlane.f32.xlu0 %v975
    %v977 = vpop.xlane.xlu0 %976
    %v978 = vmul.f32 %v974, 0.032258064
    %v979 = vmul.f32 %v977, 0.032258064
    %v980 = vrsqrt.pop %v978
    %v981 = vmul.f32 %v978, %v980
    %vm982 = vcmp.eq.f32.partialorder %v978, inf
    %v983 = vsel %vm982, %v978, %v981
    %vm984 = vcmp.eq.f32.partialorder %v978, 0.0
    %v985 = vand.u32 %v978, 2147483648
    %v986 = vsel %vm984, %v985, %v983
    %v987 = vrsqrt.pop %v979
    %v988 = vmul.f32 %v979, %v987
    %vm989 = vcmp.eq.f32.partialorder %v979, inf
    %v990 = vsel %vm989, %v979, %v988
    %vm991 = vcmp.eq.f32.partialorder %v979, 0.0
    %v992 = vand.u32 %v979, 2147483648
    %v993 = vsel %vm991, %v992, %v990
    %v994 = vadd.f32 %v986, 1e-06
    %v995 = vadd.f32 %v993, 1e-06
    %v996 = vrcp.pop %v994
    %v997 = vrcp.pop %v995
    %v998 = vmul.f32 %v968, %v996
    %v999 = vmul.f32 %v969, %v997
    %v1001 = vsel %vm131, %v998, 0
    %v1004 = vsel %vm131, %v999, 0
    %1006 = vmatprep.subr.mxu0 0.0
    %1007 = vmatpush1.msra.mxu0 %v40
    %1008 = vmatprep.subr.mxu0 0.0
    %1009 = vmatpush1.msra.mxu0 %v41
    %1010 = vmatprep.subr.mxu0 0.0
    %1011 = vmatpush1.msra.mxu0 %v42
    %1012 = vmatprep.subr.mxu0 0.0
    %1013 = vmatpush1.msra.mxu0 %v43
    %1014 = vmatprep.subr.mxu0 0.0
    %1015 = vmatpush1.msra.mxu0 0.0
    %1016 = vmatprep.subr.mxu0 0.0
    %1017 = vmatpush1.msra.mxu0 0.0
    %1018 = vmatprep.subr.mxu0 0.0
    %1019 = vmatpush1.msra.mxu0 0.0
    %1020 = vmatprep.subr.mxu0 0.0
    %1021 = vmatpush1.msra.mxu0 0.0
    %1022 = vmatprep.subr.mxu0 0.0
    %1023 = vmatpush1.msra.mxu0 0.0
    %1024 = vmatprep.subr.mxu0 0.0
    %1025 = vmatpush1.msra.mxu0 0.0
    %1026 = vmatprep.subr.mxu0 0.0
    %1027 = vmatpush1.msra.mxu0 0.0
    %1028 = vmatprep.subr.mxu0 0.0
    %1029 = vmatpush1.msra.mxu0 0.0
    %1030 = vmatprep.subr.mxu0 0.0
    %1031 = vmatpush1.msra.mxu0 0.0
    %1032 = vmatprep.subr.mxu0 0.0
    %1033 = vmatpush1.msra.mxu0 0.0
    %1034 = vmatprep.subr.mxu0 0.0
    %1035 = vmatpush1.msra.mxu0 0.0
    %1036 = vmatprep.subr.mxu0 0.0
    %1037 = vmatpush1.msra.mxu0 0.0
    %1038 = vmatprep.subr.mxu0 0.0
    %1039 = vmatpush1.msra.mxu0 0.0
    %1040 = vmatprep.subr.mxu0 0.0
    %1041 = vmatpush1.msra.mxu0 0.0
    %1042 = vmatprep.subr.mxu0 0.0
    %1043 = vmatpush1.msra.mxu0 0.0
    %1044 = vmatprep.subr.mxu0 0.0
    %1045 = vmatpush1.msra.mxu0 0.0
    %1046 = vmatprep.subr.mxu0 0.0
    %1047 = vmatpush1.msra.mxu0 0.0
    %1048 = vmatprep.subr.mxu0 0.0
    %1049 = vmatpush1.msra.mxu0 0.0
    %1050 = vmatprep.subr.mxu0 0.0
    %1051 = vmatpush1.msra.mxu0 0.0
    %1052 = vmatprep.subr.mxu0 0.0
    %1053 = vmatpush1.msra.mxu0 0.0
    %1054 = vmatprep.subr.mxu0 0.0
    %1055 = vmatpush1.msra.mxu0 0.0
    %1056 = vmatprep.subr.mxu0 0.0
    %1057 = vmatpush1.msra.mxu0 0.0
    %1058 = vmatprep.subr.mxu0 0.0
    %1059 = vmatpush1.msra.mxu0 0.0
    %1060 = vmatprep.subr.mxu0 0.0
    %1061 = vmatpush1.msra.mxu0 0.0
    %1062 = vmatprep.subr.mxu0 0.0
    %1063 = vmatpush1.msra.mxu0 0.0
    %1064 = vmatprep.subr.mxu0 0.0
    %1065 = vmatpush1.msra.mxu0 0.0
    %1066 = vmatprep.subr.mxu0 0.0
    %1067 = vmatpush1.msra.mxu0 0.0
    %1068 = vmatprep.subr.mxu0 0.0
    %1069 = vmatpush1.msra.mxu0 0.0
    %1070 = vmatprep.mubr.f32.mxu0 0.0
    %1071 = vmatmul.mubr.f32.gmra.mrb[0].mxu0 %v1001
    %v1072 = vpop.f32.mrb[0].mxu0
    %v1073 = vadd.f32 0.0, %v1072
    %v1074 = vpop.f32.mrb[0].mxu0
    %1075 = vmatprep.mubr.f32.mxu0 0.0
    %1076 = vmatmul.mubr.f32.gmra.mrb[0].mxu0 %v1004
    %v1077 = vpop.f32.mrb[0].mxu0
    %v1078 = vadd.f32 0.0, %v1077
    %v1079 = vpop.f32.mrb[0].mxu0
    %1080 = vdwg.mxu0
    %1085 = vrot.lane.b32.xlu0 %v40, 96
    %v1086 = vpop.permute.xlu0 %1085
    %1087 = vrot.lane.b32.xlu0 %v41, 96
    %v1088 = vpop.permute.xlu0 %1087
    %1089 = vrot.lane.b32.xlu0 %v42, 96
    %v1090 = vpop.permute.xlu0 %1089
    %1091 = vrot.lane.b32.xlu0 %v43, 96
    %v1092 = vpop.permute.xlu0 %1091
    %v1098 = vsel %vm131, %v34, 0
    %v1101 = vsel %vm131, %v35, 0
    %1103 = vmatprep.subr.mxu0 0.0
    %1104 = vmatpush1.msra.mxu0 %v1086
    %1105 = vmatprep.subr.mxu0 0.0
    %1106 = vmatpush1.msra.mxu0 %v1088
    %1107 = vmatprep.subr.mxu0 0.0
    %1108 = vmatpush1.msra.mxu0 %v1090
    %1109 = vmatprep.subr.mxu0 0.0
    %1110 = vmatpush1.msra.mxu0 %v1092
    %1111 = vmatprep.subr.mxu0 0.0
    %1112 = vmatpush1.msra.mxu0 0.0
    %1113 = vmatprep.subr.mxu0 0.0
    %1114 = vmatpush1.msra.mxu0 0.0
    %1115 = vmatprep.subr.mxu0 0.0
    %1116 = vmatpush1.msra.mxu0 0.0
    %1117 = vmatprep.subr.mxu0 0.0
    %1118 = vmatpush1.msra.mxu0 0.0
    %1119 = vmatprep.subr.mxu0 0.0
    %1120 = vmatpush1.msra.mxu0 0.0
    %1121 = vmatprep.subr.mxu0 0.0
    %1122 = vmatpush1.msra.mxu0 0.0
    %1123 = vmatprep.subr.mxu0 0.0
    %1124 = vmatpush1.msra.mxu0 0.0
    %1125 = vmatprep.subr.mxu0 0.0
    %1126 = vmatpush1.msra.mxu0 0.0
    %1127 = vmatprep.subr.mxu0 0.0
    %1128 = vmatpush1.msra.mxu0 0.0
    %1129 = vmatprep.subr.mxu0 0.0
    %1130 = vmatpush1.msra.mxu0 0.0
    %1131 = vmatprep.subr.mxu0 0.0
    %1132 = vmatpush1.msra.mxu0 0.0
    %1133 = vmatprep.subr.mxu0 0.0
    %1134 = vmatpush1.msra.mxu0 0.0
    %1135 = vmatprep.subr.mxu0 0.0
    %1136 = vmatpush1.msra.mxu0 0.0
    %1137 = vmatprep.subr.mxu0 0.0
    %1138 = vmatpush1.msra.mxu0 0.0
    %1139 = vmatprep.subr.mxu0 0.0
    %1140 = vmatpush1.msra.mxu0 0.0
    %1141 = vmatprep.subr.mxu0 0.0
    %1142 = vmatpush1.msra.mxu0 0.0
    %1143 = vmatprep.subr.mxu0 0.0
    %1144 = vmatpush1.msra.mxu0 0.0
    %1145 = vmatprep.subr.mxu0 0.0
    %1146 = vmatpush1.msra.mxu0 0.0
    %1147 = vmatprep.subr.mxu0 0.0
    %1148 = vmatpush1.msra.mxu0 0.0
    %1149 = vmatprep.subr.mxu0 0.0
    %1150 = vmatpush1.msra.mxu0 0.0
    %1151 = vmatprep.subr.mxu0 0.0
    %1152 = vmatpush1.msra.mxu0 0.0
    %1153 = vmatprep.subr.mxu0 0.0
    %1154 = vmatpush1.msra.mxu0 0.0
    %1155 = vmatprep.subr.mxu0 0.0
    %1156 = vmatpush1.msra.mxu0 0.0
    %1157 = vmatprep.subr.mxu0 0.0
    %1158 = vmatpush1.msra.mxu0 0.0
    %1159 = vmatprep.subr.mxu0 0.0
    %1160 = vmatpush1.msra.mxu0 0.0
    %1161 = vmatprep.subr.mxu0 0.0
    %1162 = vmatpush1.msra.mxu0 0.0
    %1163 = vmatprep.subr.mxu0 0.0
    %1164 = vmatpush1.msra.mxu0 0.0
    %1165 = vmatprep.subr.mxu0 0.0
    %1166 = vmatpush1.msra.mxu0 0.0
    %1167 = vmatprep.mubr.f32.mxu0 0.0
    %1168 = vmatmul.mubr.f32.gmra.mrb[0].mxu0 %v1098
    %v1169 = vpop.f32.mrb[0].mxu0
    %v1170 = vadd.f32 0.0, %v1169
    %v1171 = vpop.f32.mrb[0].mxu0
    %1172 = vmatprep.mubr.f32.mxu0 0.0
    %1173 = vmatmul.mubr.f32.gmra.mrb[0].mxu0 %v1101
    %v1174 = vpop.f32.mrb[0].mxu0
    %v1175 = vadd.f32 0.0, %v1174
    %v1176 = vpop.f32.mrb[0].mxu0
    %1177 = vdwg.mxu0
    %1178 = vrot.lane.b32.xlu0 %v40, 64
    %v1179 = vpop.permute.xlu0 %1178
    %1180 = vrot.lane.b32.xlu0 %v41, 64
    %v1181 = vpop.permute.xlu0 %1180
    %1182 = vrot.lane.b32.xlu0 %v42, 64
    %v1183 = vpop.permute.xlu0 %1182
    %1184 = vrot.lane.b32.xlu0 %v43, 64
    %v1185 = vpop.permute.xlu0 %1184
    %1190 = vmatprep.subr.mxu0 0.0
    %1191 = vmatpush1.msra.mxu0 %v1179
    %1192 = vmatprep.subr.mxu0 0.0
    %1193 = vmatpush1.msra.mxu0 %v1181
    %1194 = vmatprep.subr.mxu0 0.0
    %1195 = vmatpush1.msra.mxu0 %v1183
    %1196 = vmatprep.subr.mxu0 0.0
    %1197 = vmatpush1.msra.mxu0 %v1185
    %1198 = vmatprep.subr.mxu0 0.0
    %1199 = vmatpush1.msra.mxu0 0.0
    %1200 = vmatprep.subr.mxu0 0.0
    %1201 = vmatpush1.msra.mxu0 0.0
    %1202 = vmatprep.subr.mxu0 0.0
    %1203 = vmatpush1.msra.mxu0 0.0
    %1204 = vmatprep.subr.mxu0 0.0
    %1205 = vmatpush1.msra.mxu0 0.0
    %1206 = vmatprep.subr.mxu0 0.0
    %1207 = vmatpush1.msra.mxu0 0.0
    %1208 = vmatprep.subr.mxu0 0.0
    %1209 = vmatpush1.msra.mxu0 0.0
    %1210 = vmatprep.subr.mxu0 0.0
    %1211 = vmatpush1.msra.mxu0 0.0
    %1212 = vmatprep.subr.mxu0 0.0
    %1213 = vmatpush1.msra.mxu0 0.0
    %1214 = vmatprep.subr.mxu0 0.0
    %1215 = vmatpush1.msra.mxu0 0.0
    %1216 = vmatprep.subr.mxu0 0.0
    %1217 = vmatpush1.msra.mxu0 0.0
    %1218 = vmatprep.subr.mxu0 0.0
    %1219 = vmatpush1.msra.mxu0 0.0
    %1220 = vmatprep.subr.mxu0 0.0
    %1221 = vmatpush1.msra.mxu0 0.0
    %1222 = vmatprep.subr.mxu0 0.0
    %1223 = vmatpush1.msra.mxu0 0.0
    %1224 = vmatprep.subr.mxu0 0.0
    %1225 = vmatpush1.msra.mxu0 0.0
    %1226 = vmatprep.subr.mxu0 0.0
    %1227 = vmatpush1.msra.mxu0 0.0
    %1228 = vmatprep.subr.mxu0 0.0
    %1229 = vmatpush1.msra.mxu0 0.0
    %1230 = vmatprep.subr.mxu0 0.0
    %1231 = vmatpush1.msra.mxu0 0.0
    %1232 = vmatprep.subr.mxu0 0.0
    %1233 = vmatpush1.msra.mxu0 0.0
    %1234 = vmatprep.subr.mxu0 0.0
    %1235 = vmatpush1.msra.mxu0 0.0
    %1236 = vmatprep.subr.mxu0 0.0
    %1237 = vmatpush1.msra.mxu0 0.0
    %1238 = vmatprep.subr.mxu0 0.0
    %1239 = vmatpush1.msra.mxu0 0.0
    %1240 = vmatprep.subr.mxu0 0.0
    %1241 = vmatpush1.msra.mxu0 0.0
    %1242 = vmatprep.subr.mxu0 0.0
    %1243 = vmatpush1.msra.mxu0 0.0
    %1244 = vmatprep.subr.mxu0 0.0
    %1245 = vmatpush1.msra.mxu0 0.0
    %1246 = vmatprep.subr.mxu0 0.0
    %1247 = vmatpush1.msra.mxu0 0.0
    %1248 = vmatprep.subr.mxu0 0.0
    %1249 = vmatpush1.msra.mxu0 0.0
    %1250 = vmatprep.subr.mxu0 0.0
    %1251 = vmatpush1.msra.mxu0 0.0
    %1252 = vmatprep.subr.mxu0 0.0
    %1253 = vmatpush1.msra.mxu0 0.0
    %1254 = vmatprep.mubr.f32.mxu0 0.0
    %1255 = vmatmul.mubr.f32.gmra.mrb[0].mxu0 %v1098
    %v1256 = vpop.f32.mrb[0].mxu0
    %v1257 = vadd.f32 0.0, %v1256
    %v1258 = vpop.f32.mrb[0].mxu0
    %1259 = vmatprep.mubr.f32.mxu0 0.0
    %1260 = vmatmul.mubr.f32.gmra.mrb[0].mxu0 %v1101
    %v1261 = vpop.f32.mrb[0].mxu0
    %v1262 = vadd.f32 0.0, %v1261
    %v1263 = vpop.f32.mrb[0].mxu0
    %1264 = vdwg.mxu0
    %v1265 = vmul.f32 %v1170, %v80
    %v1266 = vmul.f32 %v1170, %v81
    %v1267 = vmul.f32 %v1170, %v82
    %v1268 = vmul.f32 %v1170, %v83
    %v1269 = vmul.f32 %v1175, %v80
    %v1270 = vmul.f32 %v1175, %v81
    %v1271 = vmul.f32 %v1175, %v82
    %v1272 = vmul.f32 %v1175, %v83
    %v1273 = vmul.f32 %v1257, %v80
    %v1274 = vmul.f32 %v1257, %v81
    %v1275 = vmul.f32 %v1257, %v82
    %v1276 = vmul.f32 %v1257, %v83
    %v1277 = vmul.f32 %v1262, %v80
    %v1278 = vmul.f32 %v1262, %v81
    %v1279 = vmul.f32 %v1262, %v82
    %v1280 = vmul.f32 %v1262, %v83
    %v1282 = vsel %vm131, %v1073, 0
    %v1285 = vsel %vm131, %v1265, 0
    %v1288 = vsel %vm131, %v1266, 0
    %v1291 = vsel %vm131, %v1267, 0
    %v1294 = vsel %vm131, %v1268, 0
    %1296 = vmatprep.subr.mxu0 0.0
    %1297 = vmatpush1.xpose.msra.mxu0 %v1285
    %1298 = vmatprep.subr.mxu0 0.0
    %1299 = vmatpush1.xpose.msra.mxu0 %v1288
    %1300 = vmatprep.subr.mxu0 0.0
    %1301 = vmatpush1.xpose.msra.mxu0 %v1291
    %1302 = vmatprep.subr.mxu0 0.0
    %1303 = vmatpush1.xpose.msra.mxu0 %v1294
    %1304 = vmatprep.subr.mxu0 0.0
    %1305 = vmatpush1.xpose.msra.mxu0 0.0
    %1306 = vmatprep.subr.mxu0 0.0
    %1307 = vmatpush1.xpose.msra.mxu0 0.0
    %1308 = vmatprep.subr.mxu0 0.0
    %1309 = vmatpush1.xpose.msra.mxu0 0.0
    %1310 = vmatprep.subr.mxu0 0.0
    %1311 = vmatpush1.xpose.msra.mxu0 0.0
    %1312 = vmatprep.subr.mxu0 0.0
    %1313 = vmatpush1.xpose.msra.mxu0 0.0
    %1314 = vmatprep.subr.mxu0 0.0
    %1315 = vmatpush1.xpose.msra.mxu0 0.0
    %1316 = vmatprep.subr.mxu0 0.0
    %1317 = vmatpush1.xpose.msra.mxu0 0.0
    %1318 = vmatprep.subr.mxu0 0.0
    %1319 = vmatpush1.xpose.msra.mxu0 0.0
    %1320 = vmatprep.subr.mxu0 0.0
    %1321 = vmatpush1.xpose.msra.mxu0 0.0
    %1322 = vmatprep.subr.mxu0 0.0
    %1323 = vmatpush1.xpose.msra.mxu0 0.0
    %1324 = vmatprep.subr.mxu0 0.0
    %1325 = vmatpush1.xpose.msra.mxu0 0.0
    %1326 = vmatprep.subr.mxu0 0.0
    %1327 = vmatpush1.xpose.msra.mxu0 0.0
    %1328 = vmatprep.subr.mxu0 0.0
    %1329 = vmatpush1.xpose.msra.mxu0 0.0
    %1330 = vmatprep.subr.mxu0 0.0
    %1331 = vmatpush1.xpose.msra.mxu0 0.0
    %1332 = vmatprep.subr.mxu0 0.0
    %1333 = vmatpush1.xpose.msra.mxu0 0.0
    %1334 = vmatprep.subr.mxu0 0.0
    %1335 = vmatpush1.xpose.msra.mxu0 0.0
    %1336 = vmatprep.subr.mxu0 0.0
    %1337 = vmatpush1.xpose.msra.mxu0 0.0
    %1338 = vmatprep.subr.mxu0 0.0
    %1339 = vmatpush1.xpose.msra.mxu0 0.0
    %1340 = vmatprep.subr.mxu0 0.0
    %1341 = vmatpush1.xpose.msra.mxu0 0.0
    %1342 = vmatprep.subr.mxu0 0.0
    %1343 = vmatpush1.xpose.msra.mxu0 0.0
    %1344 = vmatprep.subr.mxu0 0.0
    %1345 = vmatpush1.xpose.msra.mxu0 0.0
    %1346 = vmatprep.subr.mxu0 0.0
    %1347 = vmatpush1.xpose.msra.mxu0 0.0
    %1348 = vmatprep.subr.mxu0 0.0
    %1349 = vmatpush1.xpose.msra.mxu0 0.0
    %1350 = vmatprep.subr.mxu0 0.0
    %1351 = vmatpush1.xpose.msra.mxu0 0.0
    %1352 = vmatprep.subr.mxu0 0.0
    %1353 = vmatpush1.xpose.msra.mxu0 0.0
    %1354 = vmatprep.subr.mxu0 0.0
    %1355 = vmatpush1.xpose.msra.mxu0 0.0
    %1356 = vmatprep.subr.mxu0 0.0
    %1357 = vmatpush1.xpose.msra.mxu0 0.0
    %1358 = vmatprep.subr.mxu0 0.0
    %1359 = vmatpush1.xpose.msra.mxu0 0.0
    %1360 = vmatprep.mubr.f32.mxu0 0.0
    %1361 = vmatmul.mubr.f32.gmra.mrb[0].mxu0 %v1282
    %v1362 = vpop.f32.mrb[0].mxu0
    %v1363 = vadd.f32 0.0, %v1362
    %v1364 = vpop.f32.mrb[0].mxu0
    %1365 = vdwg.mxu0
    %v1367 = vsel %vm131, %v1078, 0
    %v1370 = vsel %vm131, %v1269, 0
    %v1373 = vsel %vm131, %v1270, 0
    %v1376 = vsel %vm131, %v1271, 0
    %v1379 = vsel %vm131, %v1272, 0
    %1381 = vmatprep.subr.mxu0 0.0
    %1382 = vmatpush1.xpose.msra.mxu0 %v1370
    %1383 = vmatprep.subr.mxu0 0.0
    %1384 = vmatpush1.xpose.msra.mxu0 %v1373
    %1385 = vmatprep.subr.mxu0 0.0
    %1386 = vmatpush1.xpose.msra.mxu0 %v1376
    %1387 = vmatprep.subr.mxu0 0.0
    %1388 = vmatpush1.xpose.msra.mxu0 %v1379
    %1389 = vmatprep.subr.mxu0 0.0
    %1390 = vmatpush1.xpose.msra.mxu0 0.0
    %1391 = vmatprep.subr.mxu0 0.0
    %1392 = vmatpush1.xpose.msra.mxu0 0.0
    %1393 = vmatprep.subr.mxu0 0.0
    %1394 = vmatpush1.xpose.msra.mxu0 0.0
    %1395 = vmatprep.subr.mxu0 0.0
    %1396 = vmatpush1.xpose.msra.mxu0 0.0
    %1397 = vmatprep.subr.mxu0 0.0
    %1398 = vmatpush1.xpose.msra.mxu0 0.0
    %1399 = vmatprep.subr.mxu0 0.0
    %1400 = vmatpush1.xpose.msra.mxu0 0.0
    %1401 = vmatprep.subr.mxu0 0.0
    %1402 = vmatpush1.xpose.msra.mxu0 0.0
    %1403 = vmatprep.subr.mxu0 0.0
    %1404 = vmatpush1.xpose.msra.mxu0 0.0
    %1405 = vmatprep.subr.mxu0 0.0
    %1406 = vmatpush1.xpose.msra.mxu0 0.0
    %1407 = vmatprep.subr.mxu0 0.0
    %1408 = vmatpush1.xpose.msra.mxu0 0.0
    %1409 = vmatprep.subr.mxu0 0.0
    %1410 = vmatpush1.xpose.msra.mxu0 0.0
    %1411 = vmatprep.subr.mxu0 0.0
    %1412 = vmatpush1.xpose.msra.mxu0 0.0
    %1413 = vmatprep.subr.mxu0 0.0
    %1414 = vmatpush1.xpose.msra.mxu0 0.0
    %1415 = vmatprep.subr.mxu0 0.0
    %1416 = vmatpush1.xpose.msra.mxu0 0.0
    %1417 = vmatprep.subr.mxu0 0.0
    %1418 = vmatpush1.xpose.msra.mxu0 0.0
    %1419 = vmatprep.subr.mxu0 0.0
    %1420 = vmatpush1.xpose.msra.mxu0 0.0
    %1421 = vmatprep.subr.mxu0 0.0
    %1422 = vmatpush1.xpose.msra.mxu0 0.0
    %1423 = vmatprep.subr.mxu0 0.0
    %1424 = vmatpush1.xpose.msra.mxu0 0.0
    %1425 = vmatprep.subr.mxu0 0.0
    %1426 = vmatpush1.xpose.msra.mxu0 0.0
    %1427 = vmatprep.subr.mxu0 0.0
    %1428 = vmatpush1.xpose.msra.mxu0 0.0
    %1429 = vmatprep.subr.mxu0 0.0
    %1430 = vmatpush1.xpose.msra.mxu0 0.0
    %1431 = vmatprep.subr.mxu0 0.0
    %1432 = vmatpush1.xpose.msra.mxu0 0.0
    %1433 = vmatprep.subr.mxu0 0.0
    %1434 = vmatpush1.xpose.msra.mxu0 0.0
    %1435 = vmatprep.subr.mxu0 0.0
    %1436 = vmatpush1.xpose.msra.mxu0 0.0
    %1437 = vmatprep.subr.mxu0 0.0
    %1438 = vmatpush1.xpose.msra.mxu0 0.0
    %1439 = vmatprep.subr.mxu0 0.0
    %1440 = vmatpush1.xpose.msra.mxu0 0.0
    %1441 = vmatprep.subr.mxu0 0.0
    %1442 = vmatpush1.xpose.msra.mxu0 0.0
    %1443 = vmatprep.subr.mxu0 0.0
    %1444 = vmatpush1.xpose.msra.mxu0 0.0
    %1445 = vmatprep.mubr.f32.mxu0 0.0
    %1446 = vmatmul.mubr.f32.gmra.mrb[0].mxu0 %v1367
    %v1447 = vpop.f32.mrb[0].mxu0
    %v1448 = vadd.f32 0.0, %v1447
    %v1449 = vpop.f32.mrb[0].mxu0
    %1450 = vdwg.mxu0
    %v1451 = vmul.f32 %v1363, 0.35355338
    %v1452 = vmul.f32 %v1448, 0.35355338
    %v1453 = vadd.f32 %v1451, %v129
    %v1454 = vadd.f32 %v1452, %v130
    %v1455 = vsel %vm131, %v1453, -inf
    %1456 = vmax.xlane.f32.xlu0 %v1455
    %v1457 = vpop.xlane.xlu0 %1456
    %v1458 = vsel %vm131, %v1454, -inf
    %1459 = vmax.xlane.f32.xlu0 %v1458
    %v1460 = vpop.xlane.xlu0 %1459
    %v1461 = vsub.f32 %v1453, %v1457
    %v1462 = vsub.f32 %v1454, %v1460
    %v1463 = vmul.f32 %v1461, 1.442695
    %v1464 = vpow.pop %v1463
    %v1465 = vmul.f32 %v1462, 1.442695
    %v1466 = vpow.pop %v1465
    %v1468 = vsel %vm131, %v1464, 0
    %v1471 = vsel %vm131, %v1466, 0
    %1473 = vmatprep.subr.mxu0 0.0
    %1474 = vmatpush1.msra.mxu0 %v80
    %1475 = vmatprep.subr.mxu0 0.0
    %1476 = vmatpush1.msra.mxu0 %v81
    %1477 = vmatprep.subr.mxu0 0.0
    %1478 = vmatpush1.msra.mxu0 %v82
    %1479 = vmatprep.subr.mxu0 0.0
    %1480 = vmatpush1.msra.mxu0 %v83
    %1481 = vmatprep.subr.mxu0 0.0
    %1482 = vmatpush1.msra.mxu0 0.0
    %1483 = vmatprep.subr.mxu0 0.0
    %1484 = vmatpush1.msra.mxu0 0.0
    %1485 = vmatprep.subr.mxu0 0.0
    %1486 = vmatpush1.msra.mxu0 0.0
    %1487 = vmatprep.subr.mxu0 0.0
    %1488 = vmatpush1.msra.mxu0 0.0
    %1489 = vmatprep.subr.mxu0 0.0
    %1490 = vmatpush1.msra.mxu0 0.0
    %1491 = vmatprep.subr.mxu0 0.0
    %1492 = vmatpush1.msra.mxu0 0.0
    %1493 = vmatprep.subr.mxu0 0.0
    %1494 = vmatpush1.msra.mxu0 0.0
    %1495 = vmatprep.subr.mxu0 0.0
    %1496 = vmatpush1.msra.mxu0 0.0
    %1497 = vmatprep.subr.mxu0 0.0
    %1498 = vmatpush1.msra.mxu0 0.0
    %1499 = vmatprep.subr.mxu0 0.0
    %1500 = vmatpush1.msra.mxu0 0.0
    %1501 = vmatprep.subr.mxu0 0.0
    %1502 = vmatpush1.msra.mxu0 0.0
    %1503 = vmatprep.subr.mxu0 0.0
    %1504 = vmatpush1.msra.mxu0 0.0
    %1505 = vmatprep.subr.mxu0 0.0
    %1506 = vmatpush1.msra.mxu0 0.0
    %1507 = vmatprep.subr.mxu0 0.0
    %1508 = vmatpush1.msra.mxu0 0.0
    %1509 = vmatprep.subr.mxu0 0.0
    %1510 = vmatpush1.msra.mxu0 0.0
    %1511 = vmatprep.subr.mxu0 0.0
    %1512 = vmatpush1.msra.mxu0 0.0
    %1513 = vmatprep.subr.mxu0 0.0
    %1514 = vmatpush1.msra.mxu0 0.0
    %1515 = vmatprep.subr.mxu0 0.0
    %1516 = vmatpush1.msra.mxu0 0.0
    %1517 = vmatprep.subr.mxu0 0.0
    %1518 = vmatpush1.msra.mxu0 0.0
    %1519 = vmatprep.subr.mxu0 0.0
    %1520 = vmatpush1.msra.mxu0 0.0
    %1521 = vmatprep.subr.mxu0 0.0
    %1522 = vmatpush1.msra.mxu0 0.0
    %1523 = vmatprep.subr.mxu0 0.0
    %1524 = vmatpush1.msra.mxu0 0.0
    %1525 = vmatprep.subr.mxu0 0.0
    %1526 = vmatpush1.msra.mxu0 0.0
    %1527 = vmatprep.subr.mxu0 0.0
    %1528 = vmatpush1.msra.mxu0 0.0
    %1529 = vmatprep.subr.mxu0 0.0
    %1530 = vmatpush1.msra.mxu0 0.0
    %1531 = vmatprep.subr.mxu0 0.0
    %1532 = vmatpush1.msra.mxu0 0.0
    %1533 = vmatprep.subr.mxu0 0.0
    %1534 = vmatpush1.msra.mxu0 0.0
    %1535 = vmatprep.subr.mxu0 0.0
    %1536 = vmatpush1.msra.mxu0 0.0
    %1537 = vmatprep.mubr.f32.mxu0 0.0
    %1538 = vmatmul.mubr.f32.gmra.mrb[0].mxu0 %v1468
    %v1539 = vpop.f32.mrb[0].mxu0
    %v1540 = vadd.f32 0.0, %v1539
    %v1541 = vpop.f32.mrb[0].mxu0
    %1542 = vmatprep.mubr.f32.mxu0 0.0
    %1543 = vmatmul.mubr.f32.gmra.mrb[0].mxu0 %v1471
    %v1544 = vpop.f32.mrb[0].mxu0
    %v1545 = vadd.f32 0.0, %v1544
    %v1546 = vpop.f32.mrb[0].mxu0
    %1547 = vdwg.mxu0
    %v1548 = vrcp.pop %v1540
    %v1549 = vrcp.pop %v1545
    %v1550 = vmul.f32 %v1464, %v1548
    %v1551 = vmul.f32 %v1466, %v1549
    %v1553 = vsel %vm131, %v1550, 0
    %1555 = vmatprep.subr.mxu0 0.0
    %1556 = vmatpush1.msra.mxu0 %v1273
    %1557 = vmatprep.subr.mxu0 0.0
    %1558 = vmatpush1.msra.mxu0 %v1274
    %1559 = vmatprep.subr.mxu0 0.0
    %1560 = vmatpush1.msra.mxu0 %v1275
    %1561 = vmatprep.subr.mxu0 0.0
    %1562 = vmatpush1.msra.mxu0 %v1276
    %1563 = vmatprep.subr.mxu0 0.0
    %1564 = vmatpush1.msra.mxu0 0.0
    %1565 = vmatprep.subr.mxu0 0.0
    %1566 = vmatpush1.msra.mxu0 0.0
    %1567 = vmatprep.subr.mxu0 0.0
    %1568 = vmatpush1.msra.mxu0 0.0
    %1569 = vmatprep.subr.mxu0 0.0
    %1570 = vmatpush1.msra.mxu0 0.0
    %1571 = vmatprep.subr.mxu0 0.0
    %1572 = vmatpush1.msra.mxu0 0.0
    %1573 = vmatprep.subr.mxu0 0.0
    %1574 = vmatpush1.msra.mxu0 0.0
    %1575 = vmatprep.subr.mxu0 0.0
    %1576 = vmatpush1.msra.mxu0 0.0
    %1577 = vmatprep.subr.mxu0 0.0
    %1578 = vmatpush1.msra.mxu0 0.0
    %1579 = vmatprep.subr.mxu0 0.0
    %1580 = vmatpush1.msra.mxu0 0.0
    %1581 = vmatprep.subr.mxu0 0.0
    %1582 = vmatpush1.msra.mxu0 0.0
    %1583 = vmatprep.subr.mxu0 0.0
    %1584 = vmatpush1.msra.mxu0 0.0
    %1585 = vmatprep.subr.mxu0 0.0
    %1586 = vmatpush1.msra.mxu0 0.0
    %1587 = vmatprep.subr.mxu0 0.0
    %1588 = vmatpush1.msra.mxu0 0.0
    %1589 = vmatprep.subr.mxu0 0.0
    %1590 = vmatpush1.msra.mxu0 0.0
    %1591 = vmatprep.subr.mxu0 0.0
    %1592 = vmatpush1.msra.mxu0 0.0
    %1593 = vmatprep.subr.mxu0 0.0
    %1594 = vmatpush1.msra.mxu0 0.0
    %1595 = vmatprep.subr.mxu0 0.0
    %1596 = vmatpush1.msra.mxu0 0.0
    %1597 = vmatprep.subr.mxu0 0.0
    %1598 = vmatpush1.msra.mxu0 0.0
    %1599 = vmatprep.subr.mxu0 0.0
    %1600 = vmatpush1.msra.mxu0 0.0
    %1601 = vmatprep.subr.mxu0 0.0
    %1602 = vmatpush1.msra.mxu0 0.0
    %1603 = vmatprep.subr.mxu0 0.0
    %1604 = vmatpush1.msra.mxu0 0.0
    %1605 = vmatprep.subr.mxu0 0.0
    %1606 = vmatpush1.msra.mxu0 0.0
    %1607 = vmatprep.subr.mxu0 0.0
    %1608 = vmatpush1.msra.mxu0 0.0
    %1609 = vmatprep.subr.mxu0 0.0
    %1610 = vmatpush1.msra.mxu0 0.0
    %1611 = vmatprep.subr.mxu0 0.0
    %1612 = vmatpush1.msra.mxu0 0.0
    %1613 = vmatprep.subr.mxu0 0.0
    %1614 = vmatpush1.msra.mxu0 0.0
    %1615 = vmatprep.subr.mxu0 0.0
    %1616 = vmatpush1.msra.mxu0 0.0
    %1617 = vmatprep.subr.mxu0 0.0
    %1618 = vmatpush1.msra.mxu0 0.0
    %1619 = vmatprep.mubr.f32.mxu0 0.0
    %1620 = vmatmul.mubr.f32.gmra.mrb[0].mxu0 %v1553
    %v1621 = vpop.f32.mrb[0].mxu0
    %v1622 = vadd.f32 0.0, %v1621
    %v1623 = vpop.f32.mrb[0].mxu0
    %1624 = vdwg.mxu0
    %v1626 = vsel %vm131, %v1551, 0
    %1628 = vmatprep.subr.mxu0 0.0
    %1629 = vmatpush1.msra.mxu0 %v1277
    %1630 = vmatprep.subr.mxu0 0.0
    %1631 = vmatpush1.msra.mxu0 %v1278
    %1632 = vmatprep.subr.mxu0 0.0
    %1633 = vmatpush1.msra.mxu0 %v1279
    %1634 = vmatprep.subr.mxu0 0.0
    %1635 = vmatpush1.msra.mxu0 %v1280
    %1636 = vmatprep.subr.mxu0 0.0
    %1637 = vmatpush1.msra.mxu0 0.0
    %1638 = vmatprep.subr.mxu0 0.0
    %1639 = vmatpush1.msra.mxu0 0.0
    %1640 = vmatprep.subr.mxu0 0.0
    %1641 = vmatpush1.msra.mxu0 0.0
    %1642 = vmatprep.subr.mxu0 0.0
    %1643 = vmatpush1.msra.mxu0 0.0
    %1644 = vmatprep.subr.mxu0 0.0
    %1645 = vmatpush1.msra.mxu0 0.0
    %1646 = vmatprep.subr.mxu0 0.0
    %1647 = vmatpush1.msra.mxu0 0.0
    %1648 = vmatprep.subr.mxu0 0.0
    %1649 = vmatpush1.msra.mxu0 0.0
    %1650 = vmatprep.subr.mxu0 0.0
    %1651 = vmatpush1.msra.mxu0 0.0
    %1652 = vmatprep.subr.mxu0 0.0
    %1653 = vmatpush1.msra.mxu0 0.0
    %1654 = vmatprep.subr.mxu0 0.0
    %1655 = vmatpush1.msra.mxu0 0.0
    %1656 = vmatprep.subr.mxu0 0.0
    %1657 = vmatpush1.msra.mxu0 0.0
    %1658 = vmatprep.subr.mxu0 0.0
    %1659 = vmatpush1.msra.mxu0 0.0
    %1660 = vmatprep.subr.mxu0 0.0
    %1661 = vmatpush1.msra.mxu0 0.0
    %1662 = vmatprep.subr.mxu0 0.0
    %1663 = vmatpush1.msra.mxu0 0.0
    %1664 = vmatprep.subr.mxu0 0.0
    %1665 = vmatpush1.msra.mxu0 0.0
    %1666 = vmatprep.subr.mxu0 0.0
    %1667 = vmatpush1.msra.mxu0 0.0
    %1668 = vmatprep.subr.mxu0 0.0
    %1669 = vmatpush1.msra.mxu0 0.0
    %1670 = vmatprep.subr.mxu0 0.0
    %1671 = vmatpush1.msra.mxu0 0.0
    %1672 = vmatprep.subr.mxu0 0.0
    %1673 = vmatpush1.msra.mxu0 0.0
    %1674 = vmatprep.subr.mxu0 0.0
    %1675 = vmatpush1.msra.mxu0 0.0
    %1676 = vmatprep.subr.mxu0 0.0
    %1677 = vmatpush1.msra.mxu0 0.0
    %1678 = vmatprep.subr.mxu0 0.0
    %1679 = vmatpush1.msra.mxu0 0.0
    %1680 = vmatprep.subr.mxu0 0.0
    %1681 = vmatpush1.msra.mxu0 0.0
    %1682 = vmatprep.subr.mxu0 0.0
    %1683 = vmatpush1.msra.mxu0 0.0
    %1684 = vmatprep.subr.mxu0 0.0
    %1685 = vmatpush1.msra.mxu0 0.0
    %1686 = vmatprep.subr.mxu0 0.0
    %1687 = vmatpush1.msra.mxu0 0.0
    %1688 = vmatprep.subr.mxu0 0.0
    %1689 = vmatpush1.msra.mxu0 0.0
    %1690 = vmatprep.subr.mxu0 0.0
    %1691 = vmatpush1.msra.mxu0 0.0
    %1692 = vmatprep.mubr.f32.mxu0 0.0
    %1693 = vmatmul.mubr.f32.gmra.mrb[0].mxu0 %v1626
    %v1694 = vpop.f32.mrb[0].mxu0
    %v1695 = vadd.f32 0.0, %v1694
    %v1696 = vpop.f32.mrb[0].mxu0
    %1697 = vdwg.mxu0
    %1698 = vrot.lane.b32.xlu0 %v40, 32
    %v1699 = vpop.permute.xlu0 %1698
    %1700 = vrot.lane.b32.xlu0 %v41, 32
    %v1701 = vpop.permute.xlu0 %1700
    %1702 = vrot.lane.b32.xlu0 %v42, 32
    %v1703 = vpop.permute.xlu0 %1702
    %1704 = vrot.lane.b32.xlu0 %v43, 32
    %v1705 = vpop.permute.xlu0 %1704
    %v1711 = vsel %vm131, %v1622, 0
    %v1714 = vsel %vm131, %v1695, 0
    %1716 = vmatprep.subr.mxu0 0.0
    %1717 = vmatpush1.msra.mxu0 %v1699
    %1718 = vmatprep.subr.mxu0 0.0
    %1719 = vmatpush1.msra.mxu0 %v1701
    %1720 = vmatprep.subr.mxu0 0.0
    %1721 = vmatpush1.msra.mxu0 %v1703
    %1722 = vmatprep.subr.mxu0 0.0
    %1723 = vmatpush1.msra.mxu0 %v1705
    %1724 = vmatprep.subr.mxu0 0.0
    %1725 = vmatpush1.msra.mxu0 0.0
    %1726 = vmatprep.subr.mxu0 0.0
    %1727 = vmatpush1.msra.mxu0 0.0
    %1728 = vmatprep.subr.mxu0 0.0
    %1729 = vmatpush1.msra.mxu0 0.0
    %1730 = vmatprep.subr.mxu0 0.0
    %1731 = vmatpush1.msra.mxu0 0.0
    %1732 = vmatprep.subr.mxu0 0.0
    %1733 = vmatpush1.msra.mxu0 0.0
    %1734 = vmatprep.subr.mxu0 0.0
    %1735 = vmatpush1.msra.mxu0 0.0
    %1736 = vmatprep.subr.mxu0 0.0
    %1737 = vmatpush1.msra.mxu0 0.0
    %1738 = vmatprep.subr.mxu0 0.0
    %1739 = vmatpush1.msra.mxu0 0.0
    %1740 = vmatprep.subr.mxu0 0.0
    %1741 = vmatpush1.msra.mxu0 0.0
    %1742 = vmatprep.subr.mxu0 0.0
    %1743 = vmatpush1.msra.mxu0 0.0
    %1744 = vmatprep.subr.mxu0 0.0
    %1745 = vmatpush1.msra.mxu0 0.0
    %1746 = vmatprep.subr.mxu0 0.0
    %1747 = vmatpush1.msra.mxu0 0.0
    %1748 = vmatprep.subr.mxu0 0.0
    %1749 = vmatpush1.msra.mxu0 0.0
    %1750 = vmatprep.subr.mxu0 0.0
    %1751 = vmatpush1.msra.mxu0 0.0
    %1752 = vmatprep.subr.mxu0 0.0
    %1753 = vmatpush1.msra.mxu0 0.0
    %1754 = vmatprep.subr.mxu0 0.0
    %1755 = vmatpush1.msra.mxu0 0.0
    %1756 = vmatprep.subr.mxu0 0.0
    %1757 = vmatpush1.msra.mxu0 0.0
    %1758 = vmatprep.subr.mxu0 0.0
    %1759 = vmatpush1.msra.mxu0 0.0
    %1760 = vmatprep.subr.mxu0 0.0
    %1761 = vmatpush1.msra.mxu0 0.0
    %1762 = vmatprep.subr.mxu0 0.0
    %1763 = vmatpush1.msra.mxu0 0.0
    %1764 = vmatprep.subr.mxu0 0.0
    %1765 = vmatpush1.msra.mxu0 0.0
    %1766 = vmatprep.subr.mxu0 0.0
    %1767 = vmatpush1.msra.mxu0 0.0
    %1768 = vmatprep.subr.mxu0 0.0
    %1769 = vmatpush1.msra.mxu0 0.0
    %1770 = vmatprep.subr.mxu0 0.0
    %1771 = vmatpush1.msra.mxu0 0.0
    %1772 = vmatprep.subr.mxu0 0.0
    %1773 = vmatpush1.msra.mxu0 0.0
    %1774 = vmatprep.subr.mxu0 0.0
    %1775 = vmatpush1.msra.mxu0 0.0
    %1776 = vmatprep.subr.mxu0 0.0
    %1777 = vmatpush1.msra.mxu0 0.0
    %1778 = vmatprep.subr.mxu0 0.0
    %1779 = vmatpush1.msra.mxu0 0.0
    %1780 = vmatprep.mubr.f32.mxu0 0.0
    %1781 = vmatmul.mubr.f32.gmra.mrb[0].mxu0 %v1711
    %v1782 = vpop.f32.mrb[0].mxu0
    %v1783 = vadd.f32 0.0, %v1782
    %v1784 = vpop.f32.mrb[0].mxu0
    %1785 = vmatprep.mubr.f32.mxu0 0.0
    %1786 = vmatmul.mubr.f32.gmra.mrb[0].mxu0 %v1714
    %v1787 = vpop.f32.mrb[0].mxu0
    %v1788 = vadd.f32 0.0, %v1787
    %v1789 = vpop.f32.mrb[0].mxu0
    %1790 = vdwg.mxu0
    %v1791 = vadd.f32 %v958, %v1783
    %v1792 = vadd.f32 %v959, %v1788
    %v1793 = vsel %vm131, %v1791, 0.0
    %1794 = vadd.xlane.f32.xlu0 %v1793
    %v1795 = vpop.xlane.xlu0 %1794
    %v1796 = vsel %vm131, %v1792, 0.0
    %1797 = vadd.xlane.f32.xlu0 %v1796
    %v1798 = vpop.xlane.xlu0 %1797
    %v1799 = vmul.f32 %v1795, %v138
    %v1800 = vmul.f32 %v1798, %v138
    %v1801 = vsub.f32 %v1791, %v1799
    %v1802 = vsub.f32 %v1792, %v1800
    %v1803 = vmul.f32 %v1801, %v1801
    %v1804 = vmul.f32 %v1802, %v1802
    %v1805 = vsel %vm131, %v1803, 0.0
    %1806 = vadd.xlane.f32.xlu0 %v1805
    %v1807 = vpop.xlane.xlu0 %1806
    %v1808 = vsel %vm131, %v1804, 0.0
    %1809 = vadd.xlane.f32.xlu0 %v1808
    %v1810 = vpop.xlane.xlu0 %1809
    %v1811 = vmul.f32 %v1807, 0.032258064
    %v1812 = vmul.f32 %v1810, 0.032258064
    %v1813 = vrsqrt.pop %v1811
    %v1814 = vmul.f32 %v1811, %v1813
    %vm1815 = vcmp.eq.f32.partialorder %v1811, inf
    %v1816 = vsel %vm1815, %v1811, %v1814
    %vm1817 = vcmp.eq.f32.partialorder %v1811, 0.0
    %v1818 = vand.u32 %v1811, 2147483648
    %v1819 = vsel %vm1817, %v1818, %v1816
    %v1820 = vrsqrt.pop %v1812
    %v1821 = vmul.f32 %v1812, %v1820
    %vm1822 = vcmp.eq.f32.partialorder %v1812, inf
    %v1823 = vsel %vm1822, %v1812, %v1821
    %vm1824 = vcmp.eq.f32.partialorder %v1812, 0.0
    %v1825 = vand.u32 %v1812, 2147483648
    %v1826 = vsel %vm1824, %v1825, %v1823
    %v1827 = vadd.f32 %v1819, 1e-06
    %v1828 = vadd.f32 %v1826, 1e-06
    %v1829 = vrcp.pop %v1827
    %v1830 = vrcp.pop %v1828
    %v1831 = vmul.f32 %v1801, %v1829
    %v1832 = vmul.f32 %v1802, %v1830
    %v1834 = vsel %vm131, %v1831, 0
    %v1837 = vsel %vm131, %v1832, 0
    %1839 = vmatprep.subr.mxu0 0.0
    %1840 = vmatpush1.msra.mxu0 %v44
    %1841 = vmatprep.subr.mxu0 0.0
    %1842 = vmatpush1.msra.mxu0 %v45
    %1843 = vmatprep.subr.mxu0 0.0
    %1844 = vmatpush1.msra.mxu0 %v46
    %1845 = vmatprep.subr.mxu0 0.0
    %1846 = vmatpush1.msra.mxu0 %v47
    %1847 = vmatprep.subr.mxu0 0.0
    %1848 = vmatpush1.msra.mxu0 0.0
    %1849 = vmatprep.subr.mxu0 0.0
    %1850 = vmatpush1.msra.mxu0 0.0
    %1851 = vmatprep.subr.mxu0 0.0
    %1852 = vmatpush1.msra.mxu0 0.0
    %1853 = vmatprep.subr.mxu0 0.0
    %1854 = vmatpush1.msra.mxu0 0.0
    %1855 = vmatprep.subr.mxu0 0.0
    %1856 = vmatpush1.msra.mxu0 0.0
    %1857 = vmatprep.subr.mxu0 0.0
    %1858 = vmatpush1.msra.mxu0 0.0
    %1859 = vmatprep.subr.mxu0 0.0
    %1860 = vmatpush1.msra.mxu0 0.0
    %1861 = vmatprep.subr.mxu0 0.0
    %1862 = vmatpush1.msra.mxu0 0.0
    %1863 = vmatprep.subr.mxu0 0.0
    %1864 = vmatpush1.msra.mxu0 0.0
    %1865 = vmatprep.subr.mxu0 0.0
    %1866 = vmatpush1.msra.mxu0 0.0
    %1867 = vmatprep.subr.mxu0 0.0
    %1868 = vmatpush1.msra.mxu0 0.0
    %1869 = vmatprep.subr.mxu0 0.0
    %1870 = vmatpush1.msra.mxu0 0.0
    %1871 = vmatprep.subr.mxu0 0.0
    %1872 = vmatpush1.msra.mxu0 0.0
    %1873 = vmatprep.subr.mxu0 0.0
    %1874 = vmatpush1.msra.mxu0 0.0
    %1875 = vmatprep.subr.mxu0 0.0
    %1876 = vmatpush1.msra.mxu0 0.0
    %1877 = vmatprep.subr.mxu0 0.0
    %1878 = vmatpush1.msra.mxu0 0.0
    %1879 = vmatprep.subr.mxu0 0.0
    %1880 = vmatpush1.msra.mxu0 0.0
    %1881 = vmatprep.subr.mxu0 0.0
    %1882 = vmatpush1.msra.mxu0 0.0
    %1883 = vmatprep.subr.mxu0 0.0
    %1884 = vmatpush1.msra.mxu0 0.0
    %1885 = vmatprep.subr.mxu0 0.0
    %1886 = vmatpush1.msra.mxu0 0.0
    %1887 = vmatprep.subr.mxu0 0.0
    %1888 = vmatpush1.msra.mxu0 0.0
    %1889 = vmatprep.subr.mxu0 0.0
    %1890 = vmatpush1.msra.mxu0 0.0
    %1891 = vmatprep.subr.mxu0 0.0
    %1892 = vmatpush1.msra.mxu0 0.0
    %1893 = vmatprep.subr.mxu0 0.0
    %1894 = vmatpush1.msra.mxu0 0.0
    %1895 = vmatprep.subr.mxu0 0.0
    %1896 = vmatpush1.msra.mxu0 0.0
    %1897 = vmatprep.subr.mxu0 0.0
    %1898 = vmatpush1.msra.mxu0 0.0
    %1899 = vmatprep.subr.mxu0 0.0
    %1900 = vmatpush1.msra.mxu0 0.0
    %1901 = vmatprep.subr.mxu0 0.0
    %1902 = vmatpush1.msra.mxu0 0.0
    %1903 = vmatprep.mubr.f32.mxu0 0.0
    %1904 = vmatmul.mubr.f32.gmra.mrb[0].mxu0 %v1834
    %v1905 = vpop.f32.mrb[0].mxu0
    %v1906 = vadd.f32 %v49, %v1905
    %v1907 = vpop.f32.mrb[0].mxu0
    %1908 = vmatprep.mubr.f32.mxu0 0.0
    %1909 = vmatmul.mubr.f32.gmra.mrb[0].mxu0 %v1837
    %v1910 = vpop.f32.mrb[0].mxu0
    %v1911 = vadd.f32 %v49, %v1910
    %v1912 = vpop.f32.mrb[0].mxu0
    %1913 = vdwg.mxu0
    %v1914 = vmax.f32 %v1906, 0.0
    %v1915 = vmax.f32 %v1911, 0.0
    %v1916 = vld [vmem:[%s3] sm:$0xff]
    %v1917 = vld [vmem:[%s3 + $0x8] sm:$0xff]
    %v1918 = vld [vmem:[%s3 + $0x10] sm:$0xff]
    %v1919 = vld [vmem:[%s3 + $0x18] sm:$0xff]
    %v1920 = vld [vmem:[%s3 + $0x20] sm:$0xff]
    %v1921 = vld [vmem:[%s3 + $0x28] sm:$0xff]
    %v1922 = vld [vmem:[%s3 + $0x30] sm:$0xff]
    %v1923 = vld [vmem:[%s3 + $0x38] sm:$0xff]
    %vm1924 = vcmask 523264
    %v1926 = vsel %vm1924, %v1914, 0
    %v1929 = vsel %vm1924, %v1915, 0
    %1931 = vmatprep.subr.mxu0 0.0
    %1932 = vmatpush1.msra.mxu0 %v1916
    %1933 = vmatprep.subr.mxu0 0.0
    %1934 = vmatpush1.msra.mxu0 %v1917
    %1935 = vmatprep.subr.mxu0 0.0
    %1936 = vmatpush1.msra.mxu0 %v1918
    %1937 = vmatprep.subr.mxu0 0.0
    %1938 = vmatpush1.msra.mxu0 %v1919
    %1939 = vmatprep.subr.mxu0 0.0
    %1940 = vmatpush1.msra.mxu0 %v1920
    %1941 = vmatprep.subr.mxu0 0.0
    %1942 = vmatpush1.msra.mxu0 %v1921
    %1943 = vmatprep.subr.mxu0 0.0
    %1944 = vmatpush1.msra.mxu0 %v1922
    %1945 = vmatprep.subr.mxu0 0.0
    %1946 = vmatpush1.msra.mxu0 %v1923
    %1947 = vmatprep.subr.mxu0 0.0
    %1948 = vmatpush1.msra.mxu0 0.0
    %1949 = vmatprep.subr.mxu0 0.0
    %1950 = vmatpush1.msra.mxu0 0.0
    %1951 = vmatprep.subr.mxu0 0.0
    %1952 = vmatpush1.msra.mxu0 0.0
    %1953 = vmatprep.subr.mxu0 0.0
    %1954 = vmatpush1.msra.mxu0 0.0
    %1955 = vmatprep.subr.mxu0 0.0
    %1956 = vmatpush1.msra.mxu0 0.0
    %1957 = vmatprep.subr.mxu0 0.0
    %1958 = vmatpush1.msra.mxu0 0.0
    %1959 = vmatprep.subr.mxu0 0.0
    %1960 = vmatpush1.msra.mxu0 0.0
    %1961 = vmatprep.subr.mxu0 0.0
    %1962 = vmatpush1.msra.mxu0 0.0
    %1963 = vmatprep.subr.mxu0 0.0
    %1964 = vmatpush1.msra.mxu0 0.0
    %1965 = vmatprep.subr.mxu0 0.0
    %1966 = vmatpush1.msra.mxu0 0.0
    %1967 = vmatprep.subr.mxu0 0.0
    %1968 = vmatpush1.msra.mxu0 0.0
    %1969 = vmatprep.subr.mxu0 0.0
    %1970 = vmatpush1.msra.mxu0 0.0
    %1971 = vmatprep.subr.mxu0 0.0
    %1972 = vmatpush1.msra.mxu0 0.0
    %1973 = vmatprep.subr.mxu0 0.0
    %1974 = vmatpush1.msra.mxu0 0.0
    %1975 = vmatprep.subr.mxu0 0.0
    %1976 = vmatpush1.msra.mxu0 0.0
    %1977 = vmatprep.subr.mxu0 0.0
    %1978 = vmatpush1.msra.mxu0 0.0
    %1979 = vmatprep.subr.mxu0 0.0
    %1980 = vmatpush1.msra.mxu0 0.0
    %1981 = vmatprep.subr.mxu0 0.0
    %1982 = vmatpush1.msra.mxu0 0.0
    %1983 = vmatprep.subr.mxu0 0.0
    %1984 = vmatpush1.msra.mxu0 0.0
    %1985 = vmatprep.subr.mxu0 0.0
    %1986 = vmatpush1.msra.mxu0 0.0
    %1987 = vmatprep.subr.mxu0 0.0
    %1988 = vmatpush1.msra.mxu0 0.0
    %1989 = vmatprep.subr.mxu0 0.0
    %1990 = vmatpush1.msra.mxu0 0.0
    %1991 = vmatprep.subr.mxu0 0.0
    %1992 = vmatpush1.msra.mxu0 0.0
    %1993 = vmatprep.subr.mxu0 0.0
    %1994 = vmatpush1.msra.mxu0 0.0
    %1995 = vmatprep.mubr.f32.mxu0 0.0
    %1996 = vmatmul.mubr.f32.gmra.mrb[0].mxu0 %v1926
    %v1997 = vpop.f32.mrb[0].mxu0
    %v1998 = vadd.f32 0.0, %v1997
    %v1999 = vpop.f32.mrb[0].mxu0
    %2000 = vmatprep.mubr.f32.mxu0 0.0
    %2001 = vmatmul.mubr.f32.gmra.mrb[0].mxu0 %v1929
    %v2002 = vpop.f32.mrb[0].mxu0
    %v2003 = vadd.f32 0.0, %v2002
    %v2004 = vpop.f32.mrb[0].mxu0
    %2005 = vdwg.mxu0
    %v2006 = vadd.f32 %v1791, %v1998
    %v2007 = vadd.f32 %v1792, %v2003
    %v2008 = vadd.f32 %v2006, %v48
    %v2009 = vadd.f32 %v2007, %v48
    %v2010 = vsel %vm131, %v2008, 0.0
    %v2011 = vsel %vm131, %v2009, 0.0
    %2012 = vst [vmem:[#allocation5] sm:$0xff] %v2010
    %2013 = vst [vmem:[#allocation5 + $0x8] sm:$0xff] %v2011
    // Predicated region
    $region22: #{tpu_custom_call.1} parent=1 // pred_check
      _
    $region23: #{tpu_custom_call.1} parent=1 // pred_check_branch
      %2015 = sbr.rel (0) target = $region25
    $region24: #{tpu_custom_call.1} parent=1 // pred_region
      %s2017 = ssub.s32 256, 256
      %2018 = vsyncadd [#allocation4], %s2017
      %s2019 = sshll.u32 [#allocation5], 4
      %s2020 = int_to_ptr.vmem [resolvable:$true] %s2019
      %2025 = dma.vmem_to_hbm [thread:$0]  %s2020, 256, %s4, [#allocation4], 128, 128, 8
    $region25: #{tpu_custom_call.1} parent=1 // pred_fallthru
      _
    // Predicated region
    $region26: #{tpu_custom_call.1} parent=1 // pred_check
      _
    $region27: #{tpu_custom_call.1} parent=1 // pred_check_branch
      %2027 = sbr.rel (0) target = $region29
    $region28: #{tpu_custom_call.1} parent=1 // pred_region
      %2028 = dma.done [#allocation4], 256
    $region29: #{tpu_custom_call.1} parent=1 // pred_fallthru
      _
    %2029 = vsyncpa [#allocation3], 1
    %2030 = vsyncpa [#allocation4], 1

</llo_original>
